<compile_context>
chip_gen: v5e
topology: v5e:2x2
jax: 0.10.0
libtpu: 0.0.40
codegen_flags: <defaults>
</compile_context>

<pallas_src>
import jax
import jax.numpy as jnp
from jax.experimental import pallas as pl
from jax.experimental.pallas import tpu as pltpu

# ----------------------- model hyper-parameters (small) ----------------------
B = 2              # batch_size
N = 8              # num_nodes
NFEAT = 16         # nfeat
NHID = 8           # nhid
NHEADS = 2         # nheads
OUT_CH = 32        # out_channels
HID2 = 64          # linear2 width
OUT3 = 32          # linear3 width
LRELU_ALPHA = 0.2  # standard GAT LeakyReLU slope


def _elu(x):
    return jnp.where(x > 0, x, jnp.exp(jnp.minimum(x, 0.0)) - 1.0)


# --------------------------- fused forward kernel -----------------------------
def gat1nn2_kernel(x_ref, xflat_ref, wall_ref, abd_ref, w1hd_ref, b1_ref,
                   w2_ref, b2_ref, w3_ref, b3_ref, o_ref):
    # x_ref:     (B, N, NFEAT)             raw graph input
    # xflat_ref: (B, N*NFEAT)              same data, flattened on the host
    # wall_ref:  (NFEAT, NHEADS*NHID)      all heads' W stacked along columns
    # abd_ref:   (NHEADS*NHID, 2*NHEADS)   block-diag [a_src | a_dst] per head
    # w1hd_ref:  (NHEADS, NHID, N, OUT_CH) linear1 weight, pre-permuted
    # b1_ref:    (1, OUT_CH)
    # w2_ref:    (N*NFEAT, 64), b2_ref: (1, 64)
    # w3_ref:    (OUT_CH+64, 32), b3_ref: (1, 32)
    # o_ref:     (B, 32)
    wall = wall_ref[...]
    abd = abd_ref[...]

    # ---- GAT heads + linear1 contraction (unrolled over tiny batch/heads) ----
    x1 = jnp.zeros((B, OUT_CH), jnp.float32)
    for b in range(B):
        xb = x_ref[b]                                               # (N, NFEAT)
        # One MXU dot gives Wh for BOTH heads.
        wh = jnp.dot(xb, wall, preferred_element_type=jnp.float32)  # (N, H*D)
        # One MXU dot gives f_src/f_dst for BOTH heads (block-diagonal a).
        fm = jnp.dot(wh, abd, preferred_element_type=jnp.float32)   # (N, 2*H)

        acc = jnp.zeros((1, OUT_CH), jnp.float32)
        for h in range(NHEADS):
            f_src = fm[:, 2 * h:2 * h + 1]                          # (N, 1)
            f_dst = fm[:, 2 * h + 1:2 * h + 2]                      # (N, 1)
            e = f_src + f_dst.T                                     # (N, N)
            e = jnp.where(e > 0, e, LRELU_ALPHA * e)                # LeakyReLU
            m = jnp.max(e, axis=-1, keepdims=True)
            p = jnp.exp(e - m)
            attn = p * pl.reciprocal(jnp.sum(p, axis=-1, keepdims=True),
                                     approx=True)
            whh = wh[:, h * NHID:(h + 1) * NHID]                    # (N, NHID)
            hp = jnp.dot(attn, whh, preferred_element_type=jnp.float32)
            g = _elu(hp)                                            # (N, NHID)

            # linear1 contribution of this (batch, head):
            #   sum_{n,d} g[n, d] * w1[n*NHEADS*NHID + h*NHID + d, :]
            # as NHID broadcast-multiply + sublane-sum steps on contiguous
            # (N, OUT_CH) weight slabs (no in-kernel reshape / relayout).
            for d in range(NHID):
                slab = w1hd_ref[h, d]                               # (N, OUT_CH)
                acc = acc + jnp.sum(g[:, d:d + 1] * slab, axis=0,
                                    keepdims=True)

        # Scatter this batch's row into the (B, OUT_CH) accumulator.
        row = (jax.lax.broadcasted_iota(jnp.int32, (B, 1), 0) == b)
        x1 = x1 + row.astype(jnp.float32) * acc

    x1 = jnp.maximum(x1 + b1_ref[...], 0.0)                         # (B, OUT_CH)

    # ---- linear2 on the flattened raw input ----
    y1 = jnp.dot(xflat_ref[...], w2_ref[...],
                 preferred_element_type=jnp.float32) + b2_ref[...]
    y1 = jnp.maximum(y1, 0.0)                                       # (B, 64)

    # ---- linear3 on cat([x1, y1], dim=1) ----
    # Two dots against row-slices of the combined w3 (single weight input),
    # avoiding an unaligned minor-dim concatenate of activations.
    w3 = w3_ref[...]
    out = (jnp.dot(x1, w3[:OUT_CH], preferred_element_type=jnp.float32)
           + jnp.dot(y1, w3[OUT_CH:], preferred_element_type=jnp.float32)
           + b3_ref[...])
    o_ref[...] = jnp.maximum(out, 0.0)                              # (B, 32)


# ------------------------------ host-side packing ------------------------------
def _pack_params(params):
    """One-time, host/XLA-side packing of parameters into kernel layouts."""
    # wall[:, h*NHID + d] = W[h, :, d]
    wall = jnp.transpose(params["W"], (1, 0, 2)).reshape(NFEAT, NHEADS * NHID)

    # Block-diagonal attention matrix: fm[:, 2h] = Wh_h @ a_src[h],
    # fm[:, 2h+1] = Wh_h @ a_dst[h].
    a_src = params["a_src"].reshape(NHEADS, NHID)
    a_dst = params["a_dst"].reshape(NHEADS, NHID)
    abd = jnp.zeros((NHEADS * NHID, 2 * NHEADS), jnp.float32)
    for h in range(NHEADS):
        abd = abd.at[h * NHID:(h + 1) * NHID, 2 * h].set(a_src[h])
        abd = abd.at[h * NHID:(h + 1) * NHID, 2 * h + 1].set(a_dst[h])

    # w1hd[h, d, n, :] = w1[n*(NHEADS*NHID) + h*NHID + d, :]
    w1hd = params["w1"].reshape(N, NHEADS, NHID, OUT_CH).transpose(1, 2, 0, 3)

    # Combined linear3 weight (single input / DMA).
    w3 = jnp.concatenate([params["w3x"], params["w3y"]], axis=0)
    return wall, abd, w1hd, w3


def gat1nn2_forward(x, params):
    wall, abd, w1hd, w3 = _pack_params(params)
    xflat = x.reshape(B, N * NFEAT)   # free, contiguous reshape on the HBM array

    full = lambda s: pl.BlockSpec(s, lambda i: (0,) * len(s))
    return pl.pallas_call(
        gat1nn2_kernel,
        out_shape=jax.ShapeDtypeStruct((B, OUT3), jnp.float32),
        grid=(1,),
        in_specs=[full(x.shape), full(xflat.shape), full(wall.shape),
                  full(abd.shape), full(w1hd.shape), full(params["b1"].shape),
                  full(params["w2"].shape), full(params["b2"].shape),
                  full(w3.shape), full(params["b3"].shape)],
        out_specs=full((B, OUT3)),
        compiler_params=pltpu.CompilerParams(
            dimension_semantics=("arbitrary",)),
    )(x, xflat, wall, abd, w1hd, params["b1"], params["w2"], params["b2"],
      w3, params["b3"])


# ------------------------------ pure-JAX reference ----------------------------
def gat1nn2_reference(x, params):
    outs = []
    for h in range(NHEADS):
        Wh = x @ params["W"][h]                                   # (B, N, NHID)
        f_src = jnp.sum(Wh * params["a_src"][h], axis=-1, keepdims=True)
        f_dst = jnp.sum(Wh * params["a_dst"][h], axis=-1, keepdims=True)
        e = f_src + jnp.swapaxes(f_dst, 1, 2)
        e = jnp.where(e > 0, e, LRELU_ALPHA * e)
        attn = jax.nn.softmax(e, axis=-1)
        hp = attn @ Wh
        outs.append(jax.nn.elu(hp))
    xcat = jnp.concatenate(outs, axis=2)
    xflat = xcat.reshape(B, -1)
    xl = jax.nn.relu(xflat @ params["w1"] + params["b1"])
    yl = jax.nn.relu(x.reshape(B, -1) @ params["w2"] + params["b2"])
    xy = jnp.concatenate([xl, yl], axis=1)
    w3 = jnp.concatenate([params["w3x"], params["w3y"]], axis=0)
    return jax.nn.relu(xy @ w3 + params["b3"])


# ---------------------------------- driver ------------------------------------
if __name__ == "__main__":
    key = jax.random.PRNGKey(0)
    ks = jax.random.split(key, 12)

    # deterministic parameter init (synthetic weights)
    params = {
        "W":     0.2 * jax.random.normal(ks[0], (NHEADS, NFEAT, NHID), jnp.float32),
        "a_src": 0.2 * jax.random.normal(ks[1], (NHEADS, 1, NHID), jnp.float32),
        "a_dst": 0.2 * jax.random.normal(ks[2], (NHEADS, 1, NHID), jnp.float32),
        "w1":  0.1 * jax.random.normal(ks[3], (N * NHEADS * NHID, OUT_CH), jnp.float32),
        "b1":  0.1 * jax.random.normal(ks[4], (1, OUT_CH), jnp.float32),
        "w2":  0.1 * jax.random.normal(ks[5], (N * NFEAT, HID2), jnp.float32),
        "b2":  0.1 * jax.random.normal(ks[6], (1, HID2), jnp.float32),
        "w3x": 0.1 * jax.random.normal(ks[7], (OUT_CH, OUT3), jnp.float32),
        "w3y": 0.1 * jax.random.normal(ks[8], (HID2, OUT3), jnp.float32),
        "b3":  0.1 * jax.random.normal(ks[9], (1, OUT3), jnp.float32),
    }

    x = jax.random.normal(ks[10], (B, N, NFEAT), jnp.float32)

    out = gat1nn2_forward(x, params)
    out = jax.block_until_ready(out)

    ref = gat1nn2_reference(x, params)
    assert out.shape == (B, OUT3), out.shape
    # slightly looser tolerance than a pure-f32 path because of the
    # approximate (EUP) reciprocal in the softmax, per the perf review.
    assert jnp.allclose(out, ref, atol=2e-3, rtol=2e-3), \
        float(jnp.max(jnp.abs(out - ref)))

    print("KERNEL_OK")
</pallas_src>

<mosaic_0001>
module attributes {stable_mosaic.version = 11 : i64} {
  func.func @gat1nn2_kernel(%arg0: i32, %arg1: memref<2x8x16xf32, #tpu.memory_space<vmem>>, %arg2: memref<2x128xf32, #tpu.memory_space<vmem>>, %arg3: memref<16x16xf32, #tpu.memory_space<vmem>>, %arg4: memref<16x4xf32, #tpu.memory_space<vmem>>, %arg5: memref<2x8x8x32xf32, #tpu.memory_space<vmem>>, %arg6: memref<1x32xf32, #tpu.memory_space<vmem>>, %arg7: memref<128x64xf32, #tpu.memory_space<vmem>>, %arg8: memref<1x64xf32, #tpu.memory_space<vmem>>, %arg9: memref<96x32xf32, #tpu.memory_space<vmem>>, %arg10: memref<1x32xf32, #tpu.memory_space<vmem>>, %arg11: memref<2x32xf32, #tpu.memory_space<vmem>>) attributes {dimension_semantics = [#tpu.dimension_semantics<arbitrary>], iteration_bounds = array<i64: 1>, scalar_prefetch = 0 : i64, scratch_operands = 0 : i64, tpu.core_type = #tpu.core_type<tc>, window_params = [{pipeline_mode = #tpu.pipeline_mode<synchronous>, transform_indices = @transform_0, window_bounds = array<i64: 2, 8, 16>}, {pipeline_mode = #tpu.pipeline_mode<synchronous>, transform_indices = @transform_1, window_bounds = array<i64: 2, 128>}, {pipeline_mode = #tpu.pipeline_mode<synchronous>, transform_indices = @transform_2, window_bounds = array<i64: 16, 16>}, {pipeline_mode = #tpu.pipeline_mode<synchronous>, transform_indices = @transform_3, window_bounds = array<i64: 16, 4>}, {pipeline_mode = #tpu.pipeline_mode<synchronous>, transform_indices = @transform_4, window_bounds = array<i64: 2, 8, 8, 32>}, {pipeline_mode = #tpu.pipeline_mode<synchronous>, transform_indices = @transform_5, window_bounds = array<i64: 1, 32>}, {pipeline_mode = #tpu.pipeline_mode<synchronous>, transform_indices = @transform_6, window_bounds = array<i64: 128, 64>}, {pipeline_mode = #tpu.pipeline_mode<synchronous>, transform_indices = @transform_7, window_bounds = array<i64: 1, 64>}, {pipeline_mode = #tpu.pipeline_mode<synchronous>, transform_indices = @transform_8, window_bounds = array<i64: 96, 32>}, {pipeline_mode = #tpu.pipeline_mode<synchronous>, transform_indices = @transform_9, window_bounds = array<i64: 1, 32>}, {pipeline_mode = #tpu.pipeline_mode<synchronous>, transform_indices = @transform_10, window_bounds = array<i64: 2, 32>}]} {
    %c0 = arith.constant 0 : index
    %c0_0 = arith.constant 0 : index
    %0 = vector.load %arg3[%c0, %c0_0] : memref<16x16xf32, #tpu.memory_space<vmem>>, vector<16x16xf32>
    %c0_1 = arith.constant 0 : index
    %c0_2 = arith.constant 0 : index
    %1 = vector.load %arg4[%c0_1, %c0_2] : memref<16x4xf32, #tpu.memory_space<vmem>>, vector<16x4xf32>
    %cst = arith.constant 0.000000e+00 : f32
    %2 = vector.broadcast %cst : f32 to vector<2x32xf32>
    %c0_3 = arith.constant 0 : index
    %c0_4 = arith.constant 0 : index
    %c0_5 = arith.constant 0 : index
    %3 = vector.load %arg1[%c0_3, %c0_4, %c0_5] : memref<2x8x16xf32, #tpu.memory_space<vmem>>, vector<1x8x16xf32>
    %4 = vector.shape_cast %3 : vector<1x8x16xf32> to vector<8x16xf32>
    %cst_6 = arith.constant dense<0.000000e+00> : vector<8x16xf32>
    %5 = tpu.matmul %4, %0, %cst_6 {dimension_numbers = #tpu.dot_dimension_numbers<[1], [0], [0], [1], [0, 0, 1, 1], [], []>} : vector<8x16xf32>, vector<16x16xf32>, vector<8x16xf32> -> vector<8x16xf32>
    %cst_7 = arith.constant dense<0.000000e+00> : vector<8x4xf32>
    %6 = tpu.matmul %5, %1, %cst_7 {dimension_numbers = #tpu.dot_dimension_numbers<[1], [0], [0], [1], [0, 0, 1, 1], [], []>} : vector<8x16xf32>, vector<16x4xf32>, vector<8x4xf32> -> vector<8x4xf32>
    %cst_8 = arith.constant 0.000000e+00 : f32
    %7 = vector.broadcast %cst_8 : f32 to vector<1x32xf32>
    %8 = vector.extract_strided_slice %6 {offsets = [0, 0], sizes = [8, 1], strides = [1, 1]} : vector<8x4xf32> to vector<8x1xf32>
    %9 = vector.extract_strided_slice %6 {offsets = [0, 1], sizes = [8, 1], strides = [1, 1]} : vector<8x4xf32> to vector<8x1xf32>
    %10 = tpu.transpose %9, [1, 0] : vector<8x1xf32> -> vector<1x8xf32>
    %11 = vector.broadcast %8 : vector<8x1xf32> to vector<8x8xf32>
    %12 = vector.broadcast %10 : vector<1x8xf32> to vector<8x8xf32>
    %13 = arith.addf %11, %12 : vector<8x8xf32>
    %cst_9 = arith.constant 0.000000e+00 : f32
    %14 = vector.broadcast %cst_9 : f32 to vector<8x8xf32>
    %15 = arith.cmpf ogt, %13, %14 : vector<8x8xf32>
    %cst_10 = arith.constant 2.000000e-01 : f32
    %16 = vector.broadcast %cst_10 : f32 to vector<8x8xf32>
    %17 = arith.mulf %16, %13 : vector<8x8xf32>
    %18 = arith.select %15, %13, %17 : vector<8x8xi1>, vector<8x8xf32>
    %cst_11 = arith.constant dense<0xFF800000> : vector<8xf32>
    %19 = vector.multi_reduction <maximumf>, %18, %cst_11 [1] : vector<8x8xf32> to vector<8xf32>
    %20 = vector.shape_cast %19 : vector<8xf32> to vector<8x1xf32>
    %21 = vector.broadcast %20 : vector<8x1xf32> to vector<8x8xf32>
    %22 = arith.subf %18, %21 : vector<8x8xf32>
    %23 = math.exp %22 : vector<8x8xf32>
    %cst_12 = arith.constant dense<0.000000e+00> : vector<8xf32>
    %24 = vector.multi_reduction <add>, %23, %cst_12 [1] : vector<8x8xf32> to vector<8xf32>
    %25 = vector.shape_cast %24 : vector<8xf32> to vector<8x1xf32>
    %26 = tpu.reciprocal %25 {approx = true} : vector<8x1xf32> -> vector<8x1xf32>
    %27 = vector.broadcast %26 : vector<8x1xf32> to vector<8x8xf32>
    %28 = arith.mulf %23, %27 : vector<8x8xf32>
    %29 = vector.extract_strided_slice %5 {offsets = [0, 0], sizes = [8, 8], strides = [1, 1]} : vector<8x16xf32> to vector<8x8xf32>
    %cst_13 = arith.constant dense<0.000000e+00> : vector<8x8xf32>
    %30 = tpu.matmul %28, %29, %cst_13 {dimension_numbers = #tpu.dot_dimension_numbers<[1], [0], [0], [1], [0, 0, 1, 1], [], []>} : vector<8x8xf32>, vector<8x8xf32>, vector<8x8xf32> -> vector<8x8xf32>
    %cst_14 = arith.constant 0.000000e+00 : f32
    %31 = vector.broadcast %cst_14 : f32 to vector<8x8xf32>
    %32 = arith.cmpf ogt, %30, %31 : vector<8x8xf32>
    %cst_15 = arith.constant 0.000000e+00 : f32
    %33 = vector.broadcast %cst_15 : f32 to vector<8x8xf32>
    %34 = arith.minimumf %30, %33 : vector<8x8xf32>
    %35 = math.exp %34 : vector<8x8xf32>
    %cst_16 = arith.constant 1.000000e+00 : f32
    %36 = vector.broadcast %cst_16 : f32 to vector<8x8xf32>
    %37 = arith.subf %35, %36 : vector<8x8xf32>
    %38 = arith.select %32, %30, %37 : vector<8x8xi1>, vector<8x8xf32>
    %c0_17 = arith.constant 0 : index
    %c0_18 = arith.constant 0 : index
    %c0_19 = arith.constant 0 : index
    %c0_20 = arith.constant 0 : index
    %39 = vector.load %arg5[%c0_17, %c0_18, %c0_19, %c0_20] : memref<2x8x8x32xf32, #tpu.memory_space<vmem>>, vector<1x1x8x32xf32>
    %40 = vector.shape_cast %39 : vector<1x1x8x32xf32> to vector<8x32xf32>
    %41 = vector.extract_strided_slice %38 {offsets = [0, 0], sizes = [8, 1], strides = [1, 1]} : vector<8x8xf32> to vector<8x1xf32>
    %42 = vector.broadcast %41 : vector<8x1xf32> to vector<8x32xf32>
    %43 = arith.mulf %42, %40 : vector<8x32xf32>
    %cst_21 = arith.constant dense<0.000000e+00> : vector<32xf32>
    %44 = vector.multi_reduction <add>, %43, %cst_21 [0] : vector<8x32xf32> to vector<32xf32>
    %45 = vector.shape_cast %44 : vector<32xf32> to vector<1x32xf32>
    %46 = arith.addf %7, %45 : vector<1x32xf32>
    %c0_22 = arith.constant 0 : index
    %c1 = arith.constant 1 : index
    %c0_23 = arith.constant 0 : index
    %c0_24 = arith.constant 0 : index
    %47 = vector.load %arg5[%c0_22, %c1, %c0_23, %c0_24] : memref<2x8x8x32xf32, #tpu.memory_space<vmem>>, vector<1x1x8x32xf32>
    %48 = vector.shape_cast %47 : vector<1x1x8x32xf32> to vector<8x32xf32>
    %49 = vector.extract_strided_slice %38 {offsets = [0, 1], sizes = [8, 1], strides = [1, 1]} : vector<8x8xf32> to vector<8x1xf32>
    %50 = vector.broadcast %49 : vector<8x1xf32> to vector<8x32xf32>
    %51 = arith.mulf %50, %48 : vector<8x32xf32>
    %cst_25 = arith.constant dense<0.000000e+00> : vector<32xf32>
    %52 = vector.multi_reduction <add>, %51, %cst_25 [0] : vector<8x32xf32> to vector<32xf32>
    %53 = vector.shape_cast %52 : vector<32xf32> to vector<1x32xf32>
    %54 = arith.addf %46, %53 : vector<1x32xf32>
    %c0_26 = arith.constant 0 : index
    %c2 = arith.constant 2 : index
    %c0_27 = arith.constant 0 : index
    %c0_28 = arith.constant 0 : index
    %55 = vector.load %arg5[%c0_26, %c2, %c0_27, %c0_28] : memref<2x8x8x32xf32, #tpu.memory_space<vmem>>, vector<1x1x8x32xf32>
    %56 = vector.shape_cast %55 : vector<1x1x8x32xf32> to vector<8x32xf32>
    %57 = vector.extract_strided_slice %38 {offsets = [0, 2], sizes = [8, 1], strides = [1, 1]} : vector<8x8xf32> to vector<8x1xf32>
    %58 = vector.broadcast %57 : vector<8x1xf32> to vector<8x32xf32>
    %59 = arith.mulf %58, %56 : vector<8x32xf32>
    %cst_29 = arith.constant dense<0.000000e+00> : vector<32xf32>
    %60 = vector.multi_reduction <add>, %59, %cst_29 [0] : vector<8x32xf32> to vector<32xf32>
    %61 = vector.shape_cast %60 : vector<32xf32> to vector<1x32xf32>
    %62 = arith.addf %54, %61 : vector<1x32xf32>
    %c0_30 = arith.constant 0 : index
    %c3 = arith.constant 3 : index
    %c0_31 = arith.constant 0 : index
    %c0_32 = arith.constant 0 : index
    %63 = vector.load %arg5[%c0_30, %c3, %c0_31, %c0_32] : memref<2x8x8x32xf32, #tpu.memory_space<vmem>>, vector<1x1x8x32xf32>
    %64 = vector.shape_cast %63 : vector<1x1x8x32xf32> to vector<8x32xf32>
    %65 = vector.extract_strided_slice %38 {offsets = [0, 3], sizes = [8, 1], strides = [1, 1]} : vector<8x8xf32> to vector<8x1xf32>
    %66 = vector.broadcast %65 : vector<8x1xf32> to vector<8x32xf32>
    %67 = arith.mulf %66, %64 : vector<8x32xf32>
    %cst_33 = arith.constant dense<0.000000e+00> : vector<32xf32>
    %68 = vector.multi_reduction <add>, %67, %cst_33 [0] : vector<8x32xf32> to vector<32xf32>
    %69 = vector.shape_cast %68 : vector<32xf32> to vector<1x32xf32>
    %70 = arith.addf %62, %69 : vector<1x32xf32>
    %c0_34 = arith.constant 0 : index
    %c4 = arith.constant 4 : index
    %c0_35 = arith.constant 0 : index
    %c0_36 = arith.constant 0 : index
    %71 = vector.load %arg5[%c0_34, %c4, %c0_35, %c0_36] : memref<2x8x8x32xf32, #tpu.memory_space<vmem>>, vector<1x1x8x32xf32>
    %72 = vector.shape_cast %71 : vector<1x1x8x32xf32> to vector<8x32xf32>
    %73 = vector.extract_strided_slice %38 {offsets = [0, 4], sizes = [8, 1], strides = [1, 1]} : vector<8x8xf32> to vector<8x1xf32>
    %74 = vector.broadcast %73 : vector<8x1xf32> to vector<8x32xf32>
    %75 = arith.mulf %74, %72 : vector<8x32xf32>
    %cst_37 = arith.constant dense<0.000000e+00> : vector<32xf32>
    %76 = vector.multi_reduction <add>, %75, %cst_37 [0] : vector<8x32xf32> to vector<32xf32>
    %77 = vector.shape_cast %76 : vector<32xf32> to vector<1x32xf32>
    %78 = arith.addf %70, %77 : vector<1x32xf32>
    %c0_38 = arith.constant 0 : index
    %c5 = arith.constant 5 : index
    %c0_39 = arith.constant 0 : index
    %c0_40 = arith.constant 0 : index
    %79 = vector.load %arg5[%c0_38, %c5, %c0_39, %c0_40] : memref<2x8x8x32xf32, #tpu.memory_space<vmem>>, vector<1x1x8x32xf32>
    %80 = vector.shape_cast %79 : vector<1x1x8x32xf32> to vector<8x32xf32>
    %81 = vector.extract_strided_slice %38 {offsets = [0, 5], sizes = [8, 1], strides = [1, 1]} : vector<8x8xf32> to vector<8x1xf32>
    %82 = vector.broadcast %81 : vector<8x1xf32> to vector<8x32xf32>
    %83 = arith.mulf %82, %80 : vector<8x32xf32>
    %cst_41 = arith.constant dense<0.000000e+00> : vector<32xf32>
    %84 = vector.multi_reduction <add>, %83, %cst_41 [0] : vector<8x32xf32> to vector<32xf32>
    %85 = vector.shape_cast %84 : vector<32xf32> to vector<1x32xf32>
    %86 = arith.addf %78, %85 : vector<1x32xf32>
    %c0_42 = arith.constant 0 : index
    %c6 = arith.constant 6 : index
    %c0_43 = arith.constant 0 : index
    %c0_44 = arith.constant 0 : index
    %87 = vector.load %arg5[%c0_42, %c6, %c0_43, %c0_44] : memref<2x8x8x32xf32, #tpu.memory_space<vmem>>, vector<1x1x8x32xf32>
    %88 = vector.shape_cast %87 : vector<1x1x8x32xf32> to vector<8x32xf32>
    %89 = vector.extract_strided_slice %38 {offsets = [0, 6], sizes = [8, 1], strides = [1, 1]} : vector<8x8xf32> to vector<8x1xf32>
    %90 = vector.broadcast %89 : vector<8x1xf32> to vector<8x32xf32>
    %91 = arith.mulf %90, %88 : vector<8x32xf32>
    %cst_45 = arith.constant dense<0.000000e+00> : vector<32xf32>
    %92 = vector.multi_reduction <add>, %91, %cst_45 [0] : vector<8x32xf32> to vector<32xf32>
    %93 = vector.shape_cast %92 : vector<32xf32> to vector<1x32xf32>
    %94 = arith.addf %86, %93 : vector<1x32xf32>
    %c0_46 = arith.constant 0 : index
    %c7 = arith.constant 7 : index
    %c0_47 = arith.constant 0 : index
    %c0_48 = arith.constant 0 : index
    %95 = vector.load %arg5[%c0_46, %c7, %c0_47, %c0_48] : memref<2x8x8x32xf32, #tpu.memory_space<vmem>>, vector<1x1x8x32xf32>
    %96 = vector.shape_cast %95 : vector<1x1x8x32xf32> to vector<8x32xf32>
    %97 = vector.extract_strided_slice %38 {offsets = [0, 7], sizes = [8, 1], strides = [1, 1]} : vector<8x8xf32> to vector<8x1xf32>
    %98 = vector.broadcast %97 : vector<8x1xf32> to vector<8x32xf32>
    %99 = arith.mulf %98, %96 : vector<8x32xf32>
    %cst_49 = arith.constant dense<0.000000e+00> : vector<32xf32>
    %100 = vector.multi_reduction <add>, %99, %cst_49 [0] : vector<8x32xf32> to vector<32xf32>
    %101 = vector.shape_cast %100 : vector<32xf32> to vector<1x32xf32>
    %102 = arith.addf %94, %101 : vector<1x32xf32>
    %103 = vector.extract_strided_slice %6 {offsets = [0, 2], sizes = [8, 1], strides = [1, 1]} : vector<8x4xf32> to vector<8x1xf32>
    %104 = vector.extract_strided_slice %6 {offsets = [0, 3], sizes = [8, 1], strides = [1, 1]} : vector<8x4xf32> to vector<8x1xf32>
    %105 = tpu.transpose %104, [1, 0] : vector<8x1xf32> -> vector<1x8xf32>
    %106 = vector.broadcast %103 : vector<8x1xf32> to vector<8x8xf32>
    %107 = vector.broadcast %105 : vector<1x8xf32> to vector<8x8xf32>
    %108 = arith.addf %106, %107 : vector<8x8xf32>
    %cst_50 = arith.constant 0.000000e+00 : f32
    %109 = vector.broadcast %cst_50 : f32 to vector<8x8xf32>
    %110 = arith.cmpf ogt, %108, %109 : vector<8x8xf32>
    %cst_51 = arith.constant 2.000000e-01 : f32
    %111 = vector.broadcast %cst_51 : f32 to vector<8x8xf32>
    %112 = arith.mulf %111, %108 : vector<8x8xf32>
    %113 = arith.select %110, %108, %112 : vector<8x8xi1>, vector<8x8xf32>
    %cst_52 = arith.constant dense<0xFF800000> : vector<8xf32>
    %114 = vector.multi_reduction <maximumf>, %113, %cst_52 [1] : vector<8x8xf32> to vector<8xf32>
    %115 = vector.shape_cast %114 : vector<8xf32> to vector<8x1xf32>
    %116 = vector.broadcast %115 : vector<8x1xf32> to vector<8x8xf32>
    %117 = arith.subf %113, %116 : vector<8x8xf32>
    %118 = math.exp %117 : vector<8x8xf32>
    %cst_53 = arith.constant dense<0.000000e+00> : vector<8xf32>
    %119 = vector.multi_reduction <add>, %118, %cst_53 [1] : vector<8x8xf32> to vector<8xf32>
    %120 = vector.shape_cast %119 : vector<8xf32> to vector<8x1xf32>
    %121 = tpu.reciprocal %120 {approx = true} : vector<8x1xf32> -> vector<8x1xf32>
    %122 = vector.broadcast %121 : vector<8x1xf32> to vector<8x8xf32>
    %123 = arith.mulf %118, %122 : vector<8x8xf32>
    %124 = vector.extract_strided_slice %5 {offsets = [0, 8], sizes = [8, 8], strides = [1, 1]} : vector<8x16xf32> to vector<8x8xf32>
    %cst_54 = arith.constant dense<0.000000e+00> : vector<8x8xf32>
    %125 = tpu.matmul %123, %124, %cst_54 {dimension_numbers = #tpu.dot_dimension_numbers<[1], [0], [0], [1], [0, 0, 1, 1], [], []>} : vector<8x8xf32>, vector<8x8xf32>, vector<8x8xf32> -> vector<8x8xf32>
    %cst_55 = arith.constant 0.000000e+00 : f32
    %126 = vector.broadcast %cst_55 : f32 to vector<8x8xf32>
    %127 = arith.cmpf ogt, %125, %126 : vector<8x8xf32>
    %cst_56 = arith.constant 0.000000e+00 : f32
    %128 = vector.broadcast %cst_56 : f32 to vector<8x8xf32>
    %129 = arith.minimumf %125, %128 : vector<8x8xf32>
    %130 = math.exp %129 : vector<8x8xf32>
    %cst_57 = arith.constant 1.000000e+00 : f32
    %131 = vector.broadcast %cst_57 : f32 to vector<8x8xf32>
    %132 = arith.subf %130, %131 : vector<8x8xf32>
    %133 = arith.select %127, %125, %132 : vector<8x8xi1>, vector<8x8xf32>
    %c1_58 = arith.constant 1 : index
    %c0_59 = arith.constant 0 : index
    %c0_60 = arith.constant 0 : index
    %c0_61 = arith.constant 0 : index
    %134 = vector.load %arg5[%c1_58, %c0_59, %c0_60, %c0_61] : memref<2x8x8x32xf32, #tpu.memory_space<vmem>>, vector<1x1x8x32xf32>
    %135 = vector.shape_cast %134 : vector<1x1x8x32xf32> to vector<8x32xf32>
    %136 = vector.extract_strided_slice %133 {offsets = [0, 0], sizes = [8, 1], strides = [1, 1]} : vector<8x8xf32> to vector<8x1xf32>
    %137 = vector.broadcast %136 : vector<8x1xf32> to vector<8x32xf32>
    %138 = arith.mulf %137, %135 : vector<8x32xf32>
    %cst_62 = arith.constant dense<0.000000e+00> : vector<32xf32>
    %139 = vector.multi_reduction <add>, %138, %cst_62 [0] : vector<8x32xf32> to vector<32xf32>
    %140 = vector.shape_cast %139 : vector<32xf32> to vector<1x32xf32>
    %141 = arith.addf %102, %140 : vector<1x32xf32>
    %c1_63 = arith.constant 1 : index
    %c1_64 = arith.constant 1 : index
    %c0_65 = arith.constant 0 : index
    %c0_66 = arith.constant 0 : index
    %142 = vector.load %arg5[%c1_63, %c1_64, %c0_65, %c0_66] : memref<2x8x8x32xf32, #tpu.memory_space<vmem>>, vector<1x1x8x32xf32>
    %143 = vector.shape_cast %142 : vector<1x1x8x32xf32> to vector<8x32xf32>
    %144 = vector.extract_strided_slice %133 {offsets = [0, 1], sizes = [8, 1], strides = [1, 1]} : vector<8x8xf32> to vector<8x1xf32>
    %145 = vector.broadcast %144 : vector<8x1xf32> to vector<8x32xf32>
    %146 = arith.mulf %145, %143 : vector<8x32xf32>
    %cst_67 = arith.constant dense<0.000000e+00> : vector<32xf32>
    %147 = vector.multi_reduction <add>, %146, %cst_67 [0] : vector<8x32xf32> to vector<32xf32>
    %148 = vector.shape_cast %147 : vector<32xf32> to vector<1x32xf32>
    %149 = arith.addf %141, %148 : vector<1x32xf32>
    %c1_68 = arith.constant 1 : index
    %c2_69 = arith.constant 2 : index
    %c0_70 = arith.constant 0 : index
    %c0_71 = arith.constant 0 : index
    %150 = vector.load %arg5[%c1_68, %c2_69, %c0_70, %c0_71] : memref<2x8x8x32xf32, #tpu.memory_space<vmem>>, vector<1x1x8x32xf32>
    %151 = vector.shape_cast %150 : vector<1x1x8x32xf32> to vector<8x32xf32>
    %152 = vector.extract_strided_slice %133 {offsets = [0, 2], sizes = [8, 1], strides = [1, 1]} : vector<8x8xf32> to vector<8x1xf32>
    %153 = vector.broadcast %152 : vector<8x1xf32> to vector<8x32xf32>
    %154 = arith.mulf %153, %151 : vector<8x32xf32>
    %cst_72 = arith.constant dense<0.000000e+00> : vector<32xf32>
    %155 = vector.multi_reduction <add>, %154, %cst_72 [0] : vector<8x32xf32> to vector<32xf32>
    %156 = vector.shape_cast %155 : vector<32xf32> to vector<1x32xf32>
    %157 = arith.addf %149, %156 : vector<1x32xf32>
    %c1_73 = arith.constant 1 : index
    %c3_74 = arith.constant 3 : index
    %c0_75 = arith.constant 0 : index
    %c0_76 = arith.constant 0 : index
    %158 = vector.load %arg5[%c1_73, %c3_74, %c0_75, %c0_76] : memref<2x8x8x32xf32, #tpu.memory_space<vmem>>, vector<1x1x8x32xf32>
    %159 = vector.shape_cast %158 : vector<1x1x8x32xf32> to vector<8x32xf32>
    %160 = vector.extract_strided_slice %133 {offsets = [0, 3], sizes = [8, 1], strides = [1, 1]} : vector<8x8xf32> to vector<8x1xf32>
    %161 = vector.broadcast %160 : vector<8x1xf32> to vector<8x32xf32>
    %162 = arith.mulf %161, %159 : vector<8x32xf32>
    %cst_77 = arith.constant dense<0.000000e+00> : vector<32xf32>
    %163 = vector.multi_reduction <add>, %162, %cst_77 [0] : vector<8x32xf32> to vector<32xf32>
    %164 = vector.shape_cast %163 : vector<32xf32> to vector<1x32xf32>
    %165 = arith.addf %157, %164 : vector<1x32xf32>
    %c1_78 = arith.constant 1 : index
    %c4_79 = arith.constant 4 : index
    %c0_80 = arith.constant 0 : index
    %c0_81 = arith.constant 0 : index
    %166 = vector.load %arg5[%c1_78, %c4_79, %c0_80, %c0_81] : memref<2x8x8x32xf32, #tpu.memory_space<vmem>>, vector<1x1x8x32xf32>
    %167 = vector.shape_cast %166 : vector<1x1x8x32xf32> to vector<8x32xf32>
    %168 = vector.extract_strided_slice %133 {offsets = [0, 4], sizes = [8, 1], strides = [1, 1]} : vector<8x8xf32> to vector<8x1xf32>
    %169 = vector.broadcast %168 : vector<8x1xf32> to vector<8x32xf32>
    %170 = arith.mulf %169, %167 : vector<8x32xf32>
    %cst_82 = arith.constant dense<0.000000e+00> : vector<32xf32>
    %171 = vector.multi_reduction <add>, %170, %cst_82 [0] : vector<8x32xf32> to vector<32xf32>
    %172 = vector.shape_cast %171 : vector<32xf32> to vector<1x32xf32>
    %173 = arith.addf %165, %172 : vector<1x32xf32>
    %c1_83 = arith.constant 1 : index
    %c5_84 = arith.constant 5 : index
    %c0_85 = arith.constant 0 : index
    %c0_86 = arith.constant 0 : index
    %174 = vector.load %arg5[%c1_83, %c5_84, %c0_85, %c0_86] : memref<2x8x8x32xf32, #tpu.memory_space<vmem>>, vector<1x1x8x32xf32>
    %175 = vector.shape_cast %174 : vector<1x1x8x32xf32> to vector<8x32xf32>
    %176 = vector.extract_strided_slice %133 {offsets = [0, 5], sizes = [8, 1], strides = [1, 1]} : vector<8x8xf32> to vector<8x1xf32>
    %177 = vector.broadcast %176 : vector<8x1xf32> to vector<8x32xf32>
    %178 = arith.mulf %177, %175 : vector<8x32xf32>
    %cst_87 = arith.constant dense<0.000000e+00> : vector<32xf32>
    %179 = vector.multi_reduction <add>, %178, %cst_87 [0] : vector<8x32xf32> to vector<32xf32>
    %180 = vector.shape_cast %179 : vector<32xf32> to vector<1x32xf32>
    %181 = arith.addf %173, %180 : vector<1x32xf32>
    %c1_88 = arith.constant 1 : index
    %c6_89 = arith.constant 6 : index
    %c0_90 = arith.constant 0 : index
    %c0_91 = arith.constant 0 : index
    %182 = vector.load %arg5[%c1_88, %c6_89, %c0_90, %c0_91] : memref<2x8x8x32xf32, #tpu.memory_space<vmem>>, vector<1x1x8x32xf32>
    %183 = vector.shape_cast %182 : vector<1x1x8x32xf32> to vector<8x32xf32>
    %184 = vector.extract_strided_slice %133 {offsets = [0, 6], sizes = [8, 1], strides = [1, 1]} : vector<8x8xf32> to vector<8x1xf32>
    %185 = vector.broadcast %184 : vector<8x1xf32> to vector<8x32xf32>
    %186 = arith.mulf %185, %183 : vector<8x32xf32>
    %cst_92 = arith.constant dense<0.000000e+00> : vector<32xf32>
    %187 = vector.multi_reduction <add>, %186, %cst_92 [0] : vector<8x32xf32> to vector<32xf32>
    %188 = vector.shape_cast %187 : vector<32xf32> to vector<1x32xf32>
    %189 = arith.addf %181, %188 : vector<1x32xf32>
    %c1_93 = arith.constant 1 : index
    %c7_94 = arith.constant 7 : index
    %c0_95 = arith.constant 0 : index
    %c0_96 = arith.constant 0 : index
    %190 = vector.load %arg5[%c1_93, %c7_94, %c0_95, %c0_96] : memref<2x8x8x32xf32, #tpu.memory_space<vmem>>, vector<1x1x8x32xf32>
    %191 = vector.shape_cast %190 : vector<1x1x8x32xf32> to vector<8x32xf32>
    %192 = vector.extract_strided_slice %133 {offsets = [0, 7], sizes = [8, 1], strides = [1, 1]} : vector<8x8xf32> to vector<8x1xf32>
    %193 = vector.broadcast %192 : vector<8x1xf32> to vector<8x32xf32>
    %194 = arith.mulf %193, %191 : vector<8x32xf32>
    %cst_97 = arith.constant dense<0.000000e+00> : vector<32xf32>
    %195 = vector.multi_reduction <add>, %194, %cst_97 [0] : vector<8x32xf32> to vector<32xf32>
    %196 = vector.shape_cast %195 : vector<32xf32> to vector<1x32xf32>
    %197 = arith.addf %189, %196 : vector<1x32xf32>
    %198 = tpu.iota {dimensions = array<i32: 0>} : vector<2x1xi32>
    %c0_i32 = arith.constant 0 : i32
    %199 = vector.broadcast %c0_i32 : i32 to vector<2x1xi32>
    %200 = arith.cmpi eq, %198, %199 : vector<2x1xi32>
    %201 = arith.extui %200 : vector<2x1xi1> to vector<2x1xi32>
    %202 = arith.sitofp %201 : vector<2x1xi32> to vector<2x1xf32>
    %203 = vector.broadcast %202 : vector<2x1xf32> to vector<2x32xf32>
    %204 = vector.broadcast %197 : vector<1x32xf32> to vector<2x32xf32>
    %205 = arith.mulf %203, %204 : vector<2x32xf32>
    %206 = arith.addf %2, %205 : vector<2x32xf32>
    %c1_98 = arith.constant 1 : index
    %c0_99 = arith.constant 0 : index
    %c0_100 = arith.constant 0 : index
    %207 = vector.load %arg1[%c1_98, %c0_99, %c0_100] : memref<2x8x16xf32, #tpu.memory_space<vmem>>, vector<1x8x16xf32>
    %208 = vector.shape_cast %207 : vector<1x8x16xf32> to vector<8x16xf32>
    %cst_101 = arith.constant dense<0.000000e+00> : vector<8x16xf32>
    %209 = tpu.matmul %208, %0, %cst_101 {dimension_numbers = #tpu.dot_dimension_numbers<[1], [0], [0], [1], [0, 0, 1, 1], [], []>} : vector<8x16xf32>, vector<16x16xf32>, vector<8x16xf32> -> vector<8x16xf32>
    %cst_102 = arith.constant dense<0.000000e+00> : vector<8x4xf32>
    %210 = tpu.matmul %209, %1, %cst_102 {dimension_numbers = #tpu.dot_dimension_numbers<[1], [0], [0], [1], [0, 0, 1, 1], [], []>} : vector<8x16xf32>, vector<16x4xf32>, vector<8x4xf32> -> vector<8x4xf32>
    %cst_103 = arith.constant 0.000000e+00 : f32
    %211 = vector.broadcast %cst_103 : f32 to vector<1x32xf32>
    %212 = vector.extract_strided_slice %210 {offsets = [0, 0], sizes = [8, 1], strides = [1, 1]} : vector<8x4xf32> to vector<8x1xf32>
    %213 = vector.extract_strided_slice %210 {offsets = [0, 1], sizes = [8, 1], strides = [1, 1]} : vector<8x4xf32> to vector<8x1xf32>
    %214 = tpu.transpose %213, [1, 0] : vector<8x1xf32> -> vector<1x8xf32>
    %215 = vector.broadcast %212 : vector<8x1xf32> to vector<8x8xf32>
    %216 = vector.broadcast %214 : vector<1x8xf32> to vector<8x8xf32>
    %217 = arith.addf %215, %216 : vector<8x8xf32>
    %cst_104 = arith.constant 0.000000e+00 : f32
    %218 = vector.broadcast %cst_104 : f32 to vector<8x8xf32>
    %219 = arith.cmpf ogt, %217, %218 : vector<8x8xf32>
    %cst_105 = arith.constant 2.000000e-01 : f32
    %220 = vector.broadcast %cst_105 : f32 to vector<8x8xf32>
    %221 = arith.mulf %220, %217 : vector<8x8xf32>
    %222 = arith.select %219, %217, %221 : vector<8x8xi1>, vector<8x8xf32>
    %cst_106 = arith.constant dense<0xFF800000> : vector<8xf32>
    %223 = vector.multi_reduction <maximumf>, %222, %cst_106 [1] : vector<8x8xf32> to vector<8xf32>
    %224 = vector.shape_cast %223 : vector<8xf32> to vector<8x1xf32>
    %225 = vector.broadcast %224 : vector<8x1xf32> to vector<8x8xf32>
    %226 = arith.subf %222, %225 : vector<8x8xf32>
    %227 = math.exp %226 : vector<8x8xf32>
    %cst_107 = arith.constant dense<0.000000e+00> : vector<8xf32>
    %228 = vector.multi_reduction <add>, %227, %cst_107 [1] : vector<8x8xf32> to vector<8xf32>
    %229 = vector.shape_cast %228 : vector<8xf32> to vector<8x1xf32>
    %230 = tpu.reciprocal %229 {approx = true} : vector<8x1xf32> -> vector<8x1xf32>
    %231 = vector.broadcast %230 : vector<8x1xf32> to vector<8x8xf32>
    %232 = arith.mulf %227, %231 : vector<8x8xf32>
    %233 = vector.extract_strided_slice %209 {offsets = [0, 0], sizes = [8, 8], strides = [1, 1]} : vector<8x16xf32> to vector<8x8xf32>
    %cst_108 = arith.constant dense<0.000000e+00> : vector<8x8xf32>
    %234 = tpu.matmul %232, %233, %cst_108 {dimension_numbers = #tpu.dot_dimension_numbers<[1], [0], [0], [1], [0, 0, 1, 1], [], []>} : vector<8x8xf32>, vector<8x8xf32>, vector<8x8xf32> -> vector<8x8xf32>
    %cst_109 = arith.constant 0.000000e+00 : f32
    %235 = vector.broadcast %cst_109 : f32 to vector<8x8xf32>
    %236 = arith.cmpf ogt, %234, %235 : vector<8x8xf32>
    %cst_110 = arith.constant 0.000000e+00 : f32
    %237 = vector.broadcast %cst_110 : f32 to vector<8x8xf32>
    %238 = arith.minimumf %234, %237 : vector<8x8xf32>
    %239 = math.exp %238 : vector<8x8xf32>
    %cst_111 = arith.constant 1.000000e+00 : f32
    %240 = vector.broadcast %cst_111 : f32 to vector<8x8xf32>
    %241 = arith.subf %239, %240 : vector<8x8xf32>
    %242 = arith.select %236, %234, %241 : vector<8x8xi1>, vector<8x8xf32>
    %c0_112 = arith.constant 0 : index
    %c0_113 = arith.constant 0 : index
    %c0_114 = arith.constant 0 : index
    %c0_115 = arith.constant 0 : index
    %243 = vector.load %arg5[%c0_112, %c0_113, %c0_114, %c0_115] : memref<2x8x8x32xf32, #tpu.memory_space<vmem>>, vector<1x1x8x32xf32>
    %244 = vector.shape_cast %243 : vector<1x1x8x32xf32> to vector<8x32xf32>
    %245 = vector.extract_strided_slice %242 {offsets = [0, 0], sizes = [8, 1], strides = [1, 1]} : vector<8x8xf32> to vector<8x1xf32>
    %246 = vector.broadcast %245 : vector<8x1xf32> to vector<8x32xf32>
    %247 = arith.mulf %246, %244 : vector<8x32xf32>
    %cst_116 = arith.constant dense<0.000000e+00> : vector<32xf32>
    %248 = vector.multi_reduction <add>, %247, %cst_116 [0] : vector<8x32xf32> to vector<32xf32>
    %249 = vector.shape_cast %248 : vector<32xf32> to vector<1x32xf32>
    %250 = arith.addf %211, %249 : vector<1x32xf32>
    %c0_117 = arith.constant 0 : index
    %c1_118 = arith.constant 1 : index
    %c0_119 = arith.constant 0 : index
    %c0_120 = arith.constant 0 : index
    %251 = vector.load %arg5[%c0_117, %c1_118, %c0_119, %c0_120] : memref<2x8x8x32xf32, #tpu.memory_space<vmem>>, vector<1x1x8x32xf32>
    %252 = vector.shape_cast %251 : vector<1x1x8x32xf32> to vector<8x32xf32>
    %253 = vector.extract_strided_slice %242 {offsets = [0, 1], sizes = [8, 1], strides = [1, 1]} : vector<8x8xf32> to vector<8x1xf32>
    %254 = vector.broadcast %253 : vector<8x1xf32> to vector<8x32xf32>
    %255 = arith.mulf %254, %252 : vector<8x32xf32>
    %cst_121 = arith.constant dense<0.000000e+00> : vector<32xf32>
    %256 = vector.multi_reduction <add>, %255, %cst_121 [0] : vector<8x32xf32> to vector<32xf32>
    %257 = vector.shape_cast %256 : vector<32xf32> to vector<1x32xf32>
    %258 = arith.addf %250, %257 : vector<1x32xf32>
    %c0_122 = arith.constant 0 : index
    %c2_123 = arith.constant 2 : index
    %c0_124 = arith.constant 0 : index
    %c0_125 = arith.constant 0 : index
    %259 = vector.load %arg5[%c0_122, %c2_123, %c0_124, %c0_125] : memref<2x8x8x32xf32, #tpu.memory_space<vmem>>, vector<1x1x8x32xf32>
    %260 = vector.shape_cast %259 : vector<1x1x8x32xf32> to vector<8x32xf32>
    %261 = vector.extract_strided_slice %242 {offsets = [0, 2], sizes = [8, 1], strides = [1, 1]} : vector<8x8xf32> to vector<8x1xf32>
    %262 = vector.broadcast %261 : vector<8x1xf32> to vector<8x32xf32>
    %263 = arith.mulf %262, %260 : vector<8x32xf32>
    %cst_126 = arith.constant dense<0.000000e+00> : vector<32xf32>
    %264 = vector.multi_reduction <add>, %263, %cst_126 [0] : vector<8x32xf32> to vector<32xf32>
    %265 = vector.shape_cast %264 : vector<32xf32> to vector<1x32xf32>
    %266 = arith.addf %258, %265 : vector<1x32xf32>
    %c0_127 = arith.constant 0 : index
    %c3_128 = arith.constant 3 : index
    %c0_129 = arith.constant 0 : index
    %c0_130 = arith.constant 0 : index
    %267 = vector.load %arg5[%c0_127, %c3_128, %c0_129, %c0_130] : memref<2x8x8x32xf32, #tpu.memory_space<vmem>>, vector<1x1x8x32xf32>
    %268 = vector.shape_cast %267 : vector<1x1x8x32xf32> to vector<8x32xf32>
    %269 = vector.extract_strided_slice %242 {offsets = [0, 3], sizes = [8, 1], strides = [1, 1]} : vector<8x8xf32> to vector<8x1xf32>
    %270 = vector.broadcast %269 : vector<8x1xf32> to vector<8x32xf32>
    %271 = arith.mulf %270, %268 : vector<8x32xf32>
    %cst_131 = arith.constant dense<0.000000e+00> : vector<32xf32>
    %272 = vector.multi_reduction <add>, %271, %cst_131 [0] : vector<8x32xf32> to vector<32xf32>
    %273 = vector.shape_cast %272 : vector<32xf32> to vector<1x32xf32>
    %274 = arith.addf %266, %273 : vector<1x32xf32>
    %c0_132 = arith.constant 0 : index
    %c4_133 = arith.constant 4 : index
    %c0_134 = arith.constant 0 : index
    %c0_135 = arith.constant 0 : index
    %275 = vector.load %arg5[%c0_132, %c4_133, %c0_134, %c0_135] : memref<2x8x8x32xf32, #tpu.memory_space<vmem>>, vector<1x1x8x32xf32>
    %276 = vector.shape_cast %275 : vector<1x1x8x32xf32> to vector<8x32xf32>
    %277 = vector.extract_strided_slice %242 {offsets = [0, 4], sizes = [8, 1], strides = [1, 1]} : vector<8x8xf32> to vector<8x1xf32>
    %278 = vector.broadcast %277 : vector<8x1xf32> to vector<8x32xf32>
    %279 = arith.mulf %278, %276 : vector<8x32xf32>
    %cst_136 = arith.constant dense<0.000000e+00> : vector<32xf32>
    %280 = vector.multi_reduction <add>, %279, %cst_136 [0] : vector<8x32xf32> to vector<32xf32>
    %281 = vector.shape_cast %280 : vector<32xf32> to vector<1x32xf32>
    %282 = arith.addf %274, %281 : vector<1x32xf32>
    %c0_137 = arith.constant 0 : index
    %c5_138 = arith.constant 5 : index
    %c0_139 = arith.constant 0 : index
    %c0_140 = arith.constant 0 : index
    %283 = vector.load %arg5[%c0_137, %c5_138, %c0_139, %c0_140] : memref<2x8x8x32xf32, #tpu.memory_space<vmem>>, vector<1x1x8x32xf32>
    %284 = vector.shape_cast %283 : vector<1x1x8x32xf32> to vector<8x32xf32>
    %285 = vector.extract_strided_slice %242 {offsets = [0, 5], sizes = [8, 1], strides = [1, 1]} : vector<8x8xf32> to vector<8x1xf32>
    %286 = vector.broadcast %285 : vector<8x1xf32> to vector<8x32xf32>
    %287 = arith.mulf %286, %284 : vector<8x32xf32>
    %cst_141 = arith.constant dense<0.000000e+00> : vector<32xf32>
    %288 = vector.multi_reduction <add>, %287, %cst_141 [0] : vector<8x32xf32> to vector<32xf32>
    %289 = vector.shape_cast %288 : vector<32xf32> to vector<1x32xf32>
    %290 = arith.addf %282, %289 : vector<1x32xf32>
    %c0_142 = arith.constant 0 : index
    %c6_143 = arith.constant 6 : index
    %c0_144 = arith.constant 0 : index
    %c0_145 = arith.constant 0 : index
    %291 = vector.load %arg5[%c0_142, %c6_143, %c0_144, %c0_145] : memref<2x8x8x32xf32, #tpu.memory_space<vmem>>, vector<1x1x8x32xf32>
    %292 = vector.shape_cast %291 : vector<1x1x8x32xf32> to vector<8x32xf32>
    %293 = vector.extract_strided_slice %242 {offsets = [0, 6], sizes = [8, 1], strides = [1, 1]} : vector<8x8xf32> to vector<8x1xf32>
    %294 = vector.broadcast %293 : vector<8x1xf32> to vector<8x32xf32>
    %295 = arith.mulf %294, %292 : vector<8x32xf32>
    %cst_146 = arith.constant dense<0.000000e+00> : vector<32xf32>
    %296 = vector.multi_reduction <add>, %295, %cst_146 [0] : vector<8x32xf32> to vector<32xf32>
    %297 = vector.shape_cast %296 : vector<32xf32> to vector<1x32xf32>
    %298 = arith.addf %290, %297 : vector<1x32xf32>
    %c0_147 = arith.constant 0 : index
    %c7_148 = arith.constant 7 : index
    %c0_149 = arith.constant 0 : index
    %c0_150 = arith.constant 0 : index
    %299 = vector.load %arg5[%c0_147, %c7_148, %c0_149, %c0_150] : memref<2x8x8x32xf32, #tpu.memory_space<vmem>>, vector<1x1x8x32xf32>
    %300 = vector.shape_cast %299 : vector<1x1x8x32xf32> to vector<8x32xf32>
    %301 = vector.extract_strided_slice %242 {offsets = [0, 7], sizes = [8, 1], strides = [1, 1]} : vector<8x8xf32> to vector<8x1xf32>
    %302 = vector.broadcast %301 : vector<8x1xf32> to vector<8x32xf32>
    %303 = arith.mulf %302, %300 : vector<8x32xf32>
    %cst_151 = arith.constant dense<0.000000e+00> : vector<32xf32>
    %304 = vector.multi_reduction <add>, %303, %cst_151 [0] : vector<8x32xf32> to vector<32xf32>
    %305 = vector.shape_cast %304 : vector<32xf32> to vector<1x32xf32>
    %306 = arith.addf %298, %305 : vector<1x32xf32>
    %307 = vector.extract_strided_slice %210 {offsets = [0, 2], sizes = [8, 1], strides = [1, 1]} : vector<8x4xf32> to vector<8x1xf32>
    %308 = vector.extract_strided_slice %210 {offsets = [0, 3], sizes = [8, 1], strides = [1, 1]} : vector<8x4xf32> to vector<8x1xf32>
    %309 = tpu.transpose %308, [1, 0] : vector<8x1xf32> -> vector<1x8xf32>
    %310 = vector.broadcast %307 : vector<8x1xf32> to vector<8x8xf32>
    %311 = vector.broadcast %309 : vector<1x8xf32> to vector<8x8xf32>
    %312 = arith.addf %310, %311 : vector<8x8xf32>
    %cst_152 = arith.constant 0.000000e+00 : f32
    %313 = vector.broadcast %cst_152 : f32 to vector<8x8xf32>
    %314 = arith.cmpf ogt, %312, %313 : vector<8x8xf32>
    %cst_153 = arith.constant 2.000000e-01 : f32
    %315 = vector.broadcast %cst_153 : f32 to vector<8x8xf32>
    %316 = arith.mulf %315, %312 : vector<8x8xf32>
    %317 = arith.select %314, %312, %316 : vector<8x8xi1>, vector<8x8xf32>
    %cst_154 = arith.constant dense<0xFF800000> : vector<8xf32>
    %318 = vector.multi_reduction <maximumf>, %317, %cst_154 [1] : vector<8x8xf32> to vector<8xf32>
    %319 = vector.shape_cast %318 : vector<8xf32> to vector<8x1xf32>
    %320 = vector.broadcast %319 : vector<8x1xf32> to vector<8x8xf32>
    %321 = arith.subf %317, %320 : vector<8x8xf32>
    %322 = math.exp %321 : vector<8x8xf32>
    %cst_155 = arith.constant dense<0.000000e+00> : vector<8xf32>
    %323 = vector.multi_reduction <add>, %322, %cst_155 [1] : vector<8x8xf32> to vector<8xf32>
    %324 = vector.shape_cast %323 : vector<8xf32> to vector<8x1xf32>
    %325 = tpu.reciprocal %324 {approx = true} : vector<8x1xf32> -> vector<8x1xf32>
    %326 = vector.broadcast %325 : vector<8x1xf32> to vector<8x8xf32>
    %327 = arith.mulf %322, %326 : vector<8x8xf32>
    %328 = vector.extract_strided_slice %209 {offsets = [0, 8], sizes = [8, 8], strides = [1, 1]} : vector<8x16xf32> to vector<8x8xf32>
    %cst_156 = arith.constant dense<0.000000e+00> : vector<8x8xf32>
    %329 = tpu.matmul %327, %328, %cst_156 {dimension_numbers = #tpu.dot_dimension_numbers<[1], [0], [0], [1], [0, 0, 1, 1], [], []>} : vector<8x8xf32>, vector<8x8xf32>, vector<8x8xf32> -> vector<8x8xf32>
    %cst_157 = arith.constant 0.000000e+00 : f32
    %330 = vector.broadcast %cst_157 : f32 to vector<8x8xf32>
    %331 = arith.cmpf ogt, %329, %330 : vector<8x8xf32>
    %cst_158 = arith.constant 0.000000e+00 : f32
    %332 = vector.broadcast %cst_158 : f32 to vector<8x8xf32>
    %333 = arith.minimumf %329, %332 : vector<8x8xf32>
    %334 = math.exp %333 : vector<8x8xf32>
    %cst_159 = arith.constant 1.000000e+00 : f32
    %335 = vector.broadcast %cst_159 : f32 to vector<8x8xf32>
    %336 = arith.subf %334, %335 : vector<8x8xf32>
    %337 = arith.select %331, %329, %336 : vector<8x8xi1>, vector<8x8xf32>
    %c1_160 = arith.constant 1 : index
    %c0_161 = arith.constant 0 : index
    %c0_162 = arith.constant 0 : index
    %c0_163 = arith.constant 0 : index
    %338 = vector.load %arg5[%c1_160, %c0_161, %c0_162, %c0_163] : memref<2x8x8x32xf32, #tpu.memory_space<vmem>>, vector<1x1x8x32xf32>
    %339 = vector.shape_cast %338 : vector<1x1x8x32xf32> to vector<8x32xf32>
    %340 = vector.extract_strided_slice %337 {offsets = [0, 0], sizes = [8, 1], strides = [1, 1]} : vector<8x8xf32> to vector<8x1xf32>
    %341 = vector.broadcast %340 : vector<8x1xf32> to vector<8x32xf32>
    %342 = arith.mulf %341, %339 : vector<8x32xf32>
    %cst_164 = arith.constant dense<0.000000e+00> : vector<32xf32>
    %343 = vector.multi_reduction <add>, %342, %cst_164 [0] : vector<8x32xf32> to vector<32xf32>
    %344 = vector.shape_cast %343 : vector<32xf32> to vector<1x32xf32>
    %345 = arith.addf %306, %344 : vector<1x32xf32>
    %c1_165 = arith.constant 1 : index
    %c1_166 = arith.constant 1 : index
    %c0_167 = arith.constant 0 : index
    %c0_168 = arith.constant 0 : index
    %346 = vector.load %arg5[%c1_165, %c1_166, %c0_167, %c0_168] : memref<2x8x8x32xf32, #tpu.memory_space<vmem>>, vector<1x1x8x32xf32>
    %347 = vector.shape_cast %346 : vector<1x1x8x32xf32> to vector<8x32xf32>
    %348 = vector.extract_strided_slice %337 {offsets = [0, 1], sizes = [8, 1], strides = [1, 1]} : vector<8x8xf32> to vector<8x1xf32>
    %349 = vector.broadcast %348 : vector<8x1xf32> to vector<8x32xf32>
    %350 = arith.mulf %349, %347 : vector<8x32xf32>
    %cst_169 = arith.constant dense<0.000000e+00> : vector<32xf32>
    %351 = vector.multi_reduction <add>, %350, %cst_169 [0] : vector<8x32xf32> to vector<32xf32>
    %352 = vector.shape_cast %351 : vector<32xf32> to vector<1x32xf32>
    %353 = arith.addf %345, %352 : vector<1x32xf32>
    %c1_170 = arith.constant 1 : index
    %c2_171 = arith.constant 2 : index
    %c0_172 = arith.constant 0 : index
    %c0_173 = arith.constant 0 : index
    %354 = vector.load %arg5[%c1_170, %c2_171, %c0_172, %c0_173] : memref<2x8x8x32xf32, #tpu.memory_space<vmem>>, vector<1x1x8x32xf32>
    %355 = vector.shape_cast %354 : vector<1x1x8x32xf32> to vector<8x32xf32>
    %356 = vector.extract_strided_slice %337 {offsets = [0, 2], sizes = [8, 1], strides = [1, 1]} : vector<8x8xf32> to vector<8x1xf32>
    %357 = vector.broadcast %356 : vector<8x1xf32> to vector<8x32xf32>
    %358 = arith.mulf %357, %355 : vector<8x32xf32>
    %cst_174 = arith.constant dense<0.000000e+00> : vector<32xf32>
    %359 = vector.multi_reduction <add>, %358, %cst_174 [0] : vector<8x32xf32> to vector<32xf32>
    %360 = vector.shape_cast %359 : vector<32xf32> to vector<1x32xf32>
    %361 = arith.addf %353, %360 : vector<1x32xf32>
    %c1_175 = arith.constant 1 : index
    %c3_176 = arith.constant 3 : index
    %c0_177 = arith.constant 0 : index
    %c0_178 = arith.constant 0 : index
    %362 = vector.load %arg5[%c1_175, %c3_176, %c0_177, %c0_178] : memref<2x8x8x32xf32, #tpu.memory_space<vmem>>, vector<1x1x8x32xf32>
    %363 = vector.shape_cast %362 : vector<1x1x8x32xf32> to vector<8x32xf32>
    %364 = vector.extract_strided_slice %337 {offsets = [0, 3], sizes = [8, 1], strides = [1, 1]} : vector<8x8xf32> to vector<8x1xf32>
    %365 = vector.broadcast %364 : vector<8x1xf32> to vector<8x32xf32>
    %366 = arith.mulf %365, %363 : vector<8x32xf32>
    %cst_179 = arith.constant dense<0.000000e+00> : vector<32xf32>
    %367 = vector.multi_reduction <add>, %366, %cst_179 [0] : vector<8x32xf32> to vector<32xf32>
    %368 = vector.shape_cast %367 : vector<32xf32> to vector<1x32xf32>
    %369 = arith.addf %361, %368 : vector<1x32xf32>
    %c1_180 = arith.constant 1 : index
    %c4_181 = arith.constant 4 : index
    %c0_182 = arith.constant 0 : index
    %c0_183 = arith.constant 0 : index
    %370 = vector.load %arg5[%c1_180, %c4_181, %c0_182, %c0_183] : memref<2x8x8x32xf32, #tpu.memory_space<vmem>>, vector<1x1x8x32xf32>
    %371 = vector.shape_cast %370 : vector<1x1x8x32xf32> to vector<8x32xf32>
    %372 = vector.extract_strided_slice %337 {offsets = [0, 4], sizes = [8, 1], strides = [1, 1]} : vector<8x8xf32> to vector<8x1xf32>
    %373 = vector.broadcast %372 : vector<8x1xf32> to vector<8x32xf32>
    %374 = arith.mulf %373, %371 : vector<8x32xf32>
    %cst_184 = arith.constant dense<0.000000e+00> : vector<32xf32>
    %375 = vector.multi_reduction <add>, %374, %cst_184 [0] : vector<8x32xf32> to vector<32xf32>
    %376 = vector.shape_cast %375 : vector<32xf32> to vector<1x32xf32>
    %377 = arith.addf %369, %376 : vector<1x32xf32>
    %c1_185 = arith.constant 1 : index
    %c5_186 = arith.constant 5 : index
    %c0_187 = arith.constant 0 : index
    %c0_188 = arith.constant 0 : index
    %378 = vector.load %arg5[%c1_185, %c5_186, %c0_187, %c0_188] : memref<2x8x8x32xf32, #tpu.memory_space<vmem>>, vector<1x1x8x32xf32>
    %379 = vector.shape_cast %378 : vector<1x1x8x32xf32> to vector<8x32xf32>
    %380 = vector.extract_strided_slice %337 {offsets = [0, 5], sizes = [8, 1], strides = [1, 1]} : vector<8x8xf32> to vector<8x1xf32>
    %381 = vector.broadcast %380 : vector<8x1xf32> to vector<8x32xf32>
    %382 = arith.mulf %381, %379 : vector<8x32xf32>
    %cst_189 = arith.constant dense<0.000000e+00> : vector<32xf32>
    %383 = vector.multi_reduction <add>, %382, %cst_189 [0] : vector<8x32xf32> to vector<32xf32>
    %384 = vector.shape_cast %383 : vector<32xf32> to vector<1x32xf32>
    %385 = arith.addf %377, %384 : vector<1x32xf32>
    %c1_190 = arith.constant 1 : index
    %c6_191 = arith.constant 6 : index
    %c0_192 = arith.constant 0 : index
    %c0_193 = arith.constant 0 : index
    %386 = vector.load %arg5[%c1_190, %c6_191, %c0_192, %c0_193] : memref<2x8x8x32xf32, #tpu.memory_space<vmem>>, vector<1x1x8x32xf32>
    %387 = vector.shape_cast %386 : vector<1x1x8x32xf32> to vector<8x32xf32>
    %388 = vector.extract_strided_slice %337 {offsets = [0, 6], sizes = [8, 1], strides = [1, 1]} : vector<8x8xf32> to vector<8x1xf32>
    %389 = vector.broadcast %388 : vector<8x1xf32> to vector<8x32xf32>
    %390 = arith.mulf %389, %387 : vector<8x32xf32>
    %cst_194 = arith.constant dense<0.000000e+00> : vector<32xf32>
    %391 = vector.multi_reduction <add>, %390, %cst_194 [0] : vector<8x32xf32> to vector<32xf32>
    %392 = vector.shape_cast %391 : vector<32xf32> to vector<1x32xf32>
    %393 = arith.addf %385, %392 : vector<1x32xf32>
    %c1_195 = arith.constant 1 : index
    %c7_196 = arith.constant 7 : index
    %c0_197 = arith.constant 0 : index
    %c0_198 = arith.constant 0 : index
    %394 = vector.load %arg5[%c1_195, %c7_196, %c0_197, %c0_198] : memref<2x8x8x32xf32, #tpu.memory_space<vmem>>, vector<1x1x8x32xf32>
    %395 = vector.shape_cast %394 : vector<1x1x8x32xf32> to vector<8x32xf32>
    %396 = vector.extract_strided_slice %337 {offsets = [0, 7], sizes = [8, 1], strides = [1, 1]} : vector<8x8xf32> to vector<8x1xf32>
    %397 = vector.broadcast %396 : vector<8x1xf32> to vector<8x32xf32>
    %398 = arith.mulf %397, %395 : vector<8x32xf32>
    %cst_199 = arith.constant dense<0.000000e+00> : vector<32xf32>
    %399 = vector.multi_reduction <add>, %398, %cst_199 [0] : vector<8x32xf32> to vector<32xf32>
    %400 = vector.shape_cast %399 : vector<32xf32> to vector<1x32xf32>
    %401 = arith.addf %393, %400 : vector<1x32xf32>
    %402 = tpu.iota {dimensions = array<i32: 0>} : vector<2x1xi32>
    %c1_i32 = arith.constant 1 : i32
    %403 = vector.broadcast %c1_i32 : i32 to vector<2x1xi32>
    %404 = arith.cmpi eq, %402, %403 : vector<2x1xi32>
    %405 = arith.extui %404 : vector<2x1xi1> to vector<2x1xi32>
    %406 = arith.sitofp %405 : vector<2x1xi32> to vector<2x1xf32>
    %407 = vector.broadcast %406 : vector<2x1xf32> to vector<2x32xf32>
    %408 = vector.broadcast %401 : vector<1x32xf32> to vector<2x32xf32>
    %409 = arith.mulf %407, %408 : vector<2x32xf32>
    %410 = arith.addf %206, %409 : vector<2x32xf32>
    %c0_200 = arith.constant 0 : index
    %c0_201 = arith.constant 0 : index
    %411 = vector.load %arg6[%c0_200, %c0_201] : memref<1x32xf32, #tpu.memory_space<vmem>>, vector<1x32xf32>
    %412 = vector.broadcast %411 : vector<1x32xf32> to vector<2x32xf32>
    %413 = arith.addf %410, %412 : vector<2x32xf32>
    %cst_202 = arith.constant 0.000000e+00 : f32
    %414 = vector.broadcast %cst_202 : f32 to vector<2x32xf32>
    %415 = arith.maximumf %413, %414 : vector<2x32xf32>
    %c0_203 = arith.constant 0 : index
    %c0_204 = arith.constant 0 : index
    %416 = vector.load %arg2[%c0_203, %c0_204] : memref<2x128xf32, #tpu.memory_space<vmem>>, vector<2x128xf32>
    %c0_205 = arith.constant 0 : index
    %c0_206 = arith.constant 0 : index
    %417 = vector.load %arg7[%c0_205, %c0_206] : memref<128x64xf32, #tpu.memory_space<vmem>>, vector<128x64xf32>
    %cst_207 = arith.constant dense<0.000000e+00> : vector<2x64xf32>
    %418 = tpu.matmul %416, %417, %cst_207 {dimension_numbers = #tpu.dot_dimension_numbers<[1], [0], [0], [1], [0, 0, 1, 1], [], []>} : vector<2x128xf32>, vector<128x64xf32>, vector<2x64xf32> -> vector<2x64xf32>
    %c0_208 = arith.constant 0 : index
    %c0_209 = arith.constant 0 : index
    %419 = vector.load %arg8[%c0_208, %c0_209] : memref<1x64xf32, #tpu.memory_space<vmem>>, vector<1x64xf32>
    %420 = vector.broadcast %419 : vector<1x64xf32> to vector<2x64xf32>
    %421 = arith.addf %418, %420 : vector<2x64xf32>
    %cst_210 = arith.constant 0.000000e+00 : f32
    %422 = vector.broadcast %cst_210 : f32 to vector<2x64xf32>
    %423 = arith.maximumf %421, %422 : vector<2x64xf32>
    %c0_211 = arith.constant 0 : index
    %c0_212 = arith.constant 0 : index
    %424 = vector.load %arg9[%c0_211, %c0_212] : memref<96x32xf32, #tpu.memory_space<vmem>>, vector<96x32xf32>
    %425 = vector.extract_strided_slice %424 {offsets = [0, 0], sizes = [32, 32], strides = [1, 1]} : vector<96x32xf32> to vector<32x32xf32>
    %cst_213 = arith.constant dense<0.000000e+00> : vector<2x32xf32>
    %426 = tpu.matmul %415, %425, %cst_213 {dimension_numbers = #tpu.dot_dimension_numbers<[1], [0], [0], [1], [0, 0, 1, 1], [], []>} : vector<2x32xf32>, vector<32x32xf32>, vector<2x32xf32> -> vector<2x32xf32>
    %427 = vector.extract_strided_slice %424 {offsets = [32, 0], sizes = [64, 32], strides = [1, 1]} : vector<96x32xf32> to vector<64x32xf32>
    %cst_214 = arith.constant dense<0.000000e+00> : vector<2x32xf32>
    %428 = tpu.matmul %423, %427, %cst_214 {dimension_numbers = #tpu.dot_dimension_numbers<[1], [0], [0], [1], [0, 0, 1, 1], [], []>} : vector<2x64xf32>, vector<64x32xf32>, vector<2x32xf32> -> vector<2x32xf32>
    %429 = arith.addf %426, %428 : vector<2x32xf32>
    %c0_215 = arith.constant 0 : index
    %c0_216 = arith.constant 0 : index
    %430 = vector.load %arg10[%c0_215, %c0_216] : memref<1x32xf32, #tpu.memory_space<vmem>>, vector<1x32xf32>
    %431 = vector.broadcast %430 : vector<1x32xf32> to vector<2x32xf32>
    %432 = arith.addf %429, %431 : vector<2x32xf32>
    %cst_217 = arith.constant 0.000000e+00 : f32
    %433 = vector.broadcast %cst_217 : f32 to vector<2x32xf32>
    %434 = arith.maximumf %432, %433 : vector<2x32xf32>
    %c0_218 = arith.constant 0 : index
    %c0_219 = arith.constant 0 : index
    %435 = vector.load %arg11[%c0_218, %c0_219] : memref<2x32xf32, #tpu.memory_space<vmem>>, vector<2x32xf32>
    tpu.vector_store %arg11[%c0_218, %c0_219], %434 {strides = array<i32>} : memref<2x32xf32, #tpu.memory_space<vmem>>, vector<2x32xf32>,
    return
  }
  func.func @transform_0(%arg0: i32) -> (i32, i32, i32) {
    %c0_i32 = arith.constant 0 : i32
    %c0_i32_0 = arith.constant 0 : i32
    %c0_i32_1 = arith.constant 0 : i32
    %c0_i32_2 = arith.constant 0 : i32
    return %c0_i32, %c0_i32_0, %c0_i32_1 : i32, i32, i32
  }
  func.func @transform_1(%arg0: i32) -> (i32, i32) {
    %c0_i32 = arith.constant 0 : i32
    %c0_i32_0 = arith.constant 0 : i32
    %c0_i32_1 = arith.constant 0 : i32
    return %c0_i32, %c0_i32_0 : i32, i32
  }
  func.func @transform_2(%arg0: i32) -> (i32, i32) {
    %c0_i32 = arith.constant 0 : i32
    %c0_i32_0 = arith.constant 0 : i32
    %c0_i32_1 = arith.constant 0 : i32
    return %c0_i32, %c0_i32_0 : i32, i32
  }
  func.func @transform_3(%arg0: i32) -> (i32, i32) {
    %c0_i32 = arith.constant 0 : i32
    %c0_i32_0 = arith.constant 0 : i32
    %c0_i32_1 = arith.constant 0 : i32
    return %c0_i32, %c0_i32_0 : i32, i32
  }
  func.func @transform_4(%arg0: i32) -> (i32, i32, i32, i32) {
    %c0_i32 = arith.constant 0 : i32
    %c0_i32_0 = arith.constant 0 : i32
    %c0_i32_1 = arith.constant 0 : i32
    %c0_i32_2 = arith.constant 0 : i32
    %c0_i32_3 = arith.constant 0 : i32
    return %c0_i32, %c0_i32_0, %c0_i32_1, %c0_i32_2 : i32, i32, i32, i32
  }
  func.func @transform_5(%arg0: i32) -> (i32, i32) {
    %c0_i32 = arith.constant 0 : i32
    %c0_i32_0 = arith.constant 0 : i32
    %c0_i32_1 = arith.constant 0 : i32
    return %c0_i32, %c0_i32_0 : i32, i32
  }
  func.func @transform_6(%arg0: i32) -> (i32, i32) {
    %c0_i32 = arith.constant 0 : i32
    %c0_i32_0 = arith.constant 0 : i32
    %c0_i32_1 = arith.constant 0 : i32
    return %c0_i32, %c0_i32_0 : i32, i32
  }
  func.func @transform_7(%arg0: i32) -> (i32, i32) {
    %c0_i32 = arith.constant 0 : i32
    %c0_i32_0 = arith.constant 0 : i32
    %c0_i32_1 = arith.constant 0 : i32
    return %c0_i32, %c0_i32_0 : i32, i32
  }
  func.func @transform_8(%arg0: i32) -> (i32, i32) {
    %c0_i32 = arith.constant 0 : i32
    %c0_i32_0 = arith.constant 0 : i32
    %c0_i32_1 = arith.constant 0 : i32
    return %c0_i32, %c0_i32_0 : i32, i32
  }
  func.func @transform_9(%arg0: i32) -> (i32, i32) {
    %c0_i32 = arith.constant 0 : i32
    %c0_i32_0 = arith.constant 0 : i32
    %c0_i32_1 = arith.constant 0 : i32
    return %c0_i32, %c0_i32_0 : i32, i32
  }
  func.func @transform_10(%arg0: i32) -> (i32, i32) {
    %c0_i32 = arith.constant 0 : i32
    %c0_i32_0 = arith.constant 0 : i32
    %c0_i32_1 = arith.constant 0 : i32
    return %c0_i32, %c0_i32_0 : i32, i32
  }
}

</mosaic_0001>

<llo_original>
// kernel: tpu_custom_call.1
$region0: #{tpu_custom_call.1}
  #allocation0 [shape = 'u32[]', space=smem, size = 0x4, offset = 0x4, fixed_abs, tag = 'smem constant byte address 0x4 - core index']
  #allocation1 [shape = 'u32[72,128]{1,0:T(1,128)}', space=vmem, size = 0x9000, scoped, tag = 'internal scratch']
  %s0 = inlined_call_operand.vmem [shape: f32[2,8,16], index: 0, kind: input, shape index: {}]
  %s1 = inlined_call_operand.vmem [shape: f32[2,128], index: 1, kind: input, shape index: {}]
  %s2 = inlined_call_operand.vmem [shape: f32[16,16], index: 2, kind: input, shape index: {}]
  %s3 = inlined_call_operand.vmem [shape: f32[16,4], index: 3, kind: input, shape index: {}]
  %s4 = inlined_call_operand.vmem [shape: f32[2,8,8,32], index: 4, kind: input, shape index: {}]
  %s5 = inlined_call_operand.vmem [shape: f32[1,32], index: 5, kind: input, shape index: {}]
  %s6 = inlined_call_operand.vmem [shape: f32[128,64], index: 6, kind: input, shape index: {}]
  %s7 = inlined_call_operand.vmem [shape: f32[1,64], index: 7, kind: input, shape index: {}]
  %s8 = inlined_call_operand.vmem [shape: f32[96,32], index: 8, kind: input, shape index: {}]
  %s9 = inlined_call_operand.vmem [shape: f32[1,32], index: 9, kind: input, shape index: {}]
  %s10 = inlined_call_operand.hbm [shape: f32[2,32], index: 10, kind: output, shape index: {}]
  %s11 = sld [smem:[#allocation0]]
  $region50: #{tpu_custom_call.1} parent=0
    _
  %s13 = ssub.s32 1, %s11
  %s14 = scalar_select 0, %s13, %s11
  $region1: #{tpu_custom_call.1} parent=0
    #allocation2 [shape = 'u8[1024]{0}', space=vmem, size = 0x400, scoped, tag = 'output window, operand 0, single buffered']
    #allocation3 [shape = 's32[1]{0}', space=sflag, size = 0x4, scoped, tag = 'scoped memory for tpu_custom_call.1']
    %15 = vsyncpa [#allocation3], 0
    // Predicated region
    $region2: #{tpu_custom_call.1} parent=1 // pred_check
      _
    $region3: #{tpu_custom_call.1} parent=1 // pred_check_branch
      %17 = sbr.rel (0) target = $region5
    $region4: #{tpu_custom_call.1} parent=1 // pred_region
      _
    $region5: #{tpu_custom_call.1} parent=1 // pred_fallthru
      _
    // Predicated region
    $region6: #{tpu_custom_call.1} parent=1 // pred_check
      _
    $region7: #{tpu_custom_call.1} parent=1 // pred_check_branch
      %19 = sbr.rel (0) target = $region9
    $region8: #{tpu_custom_call.1} parent=1 // pred_region
      _
    $region9: #{tpu_custom_call.1} parent=1 // pred_fallthru
      _
    // Predicated region
    $region10: #{tpu_custom_call.1} parent=1 // pred_check
      _
    $region11: #{tpu_custom_call.1} parent=1 // pred_check_branch
      %21 = sbr.rel (0) target = $region13
    $region12: #{tpu_custom_call.1} parent=1 // pred_region
      _
    $region13: #{tpu_custom_call.1} parent=1 // pred_fallthru
      _
    // Predicated region
    $region14: #{tpu_custom_call.1} parent=1 // pred_check
      _
    $region15: #{tpu_custom_call.1} parent=1 // pred_check_branch
      %23 = sbr.rel (0) target = $region17
    $region16: #{tpu_custom_call.1} parent=1 // pred_region
      _
    $region17: #{tpu_custom_call.1} parent=1 // pred_fallthru
      _
    // Predicated region
    $region18: #{tpu_custom_call.1} parent=1 // pred_check
      _
    $region19: #{tpu_custom_call.1} parent=1 // pred_check_branch
      %25 = sbr.rel (0) target = $region21
    $region20: #{tpu_custom_call.1} parent=1 // pred_region
      _
    $region21: #{tpu_custom_call.1} parent=1 // pred_fallthru
      _
    // Predicated region
    $region22: #{tpu_custom_call.1} parent=1 // pred_check
      _
    $region23: #{tpu_custom_call.1} parent=1 // pred_check_branch
      %27 = sbr.rel (0) target = $region25
    $region24: #{tpu_custom_call.1} parent=1 // pred_region
      _
    $region25: #{tpu_custom_call.1} parent=1 // pred_fallthru
      _
    // Predicated region
    $region26: #{tpu_custom_call.1} parent=1 // pred_check
      _
    $region27: #{tpu_custom_call.1} parent=1 // pred_check_branch
      %29 = sbr.rel (0) target = $region29
    $region28: #{tpu_custom_call.1} parent=1 // pred_region
      _
    $region29: #{tpu_custom_call.1} parent=1 // pred_fallthru
      _
    // Predicated region
    $region30: #{tpu_custom_call.1} parent=1 // pred_check
      _
    $region31: #{tpu_custom_call.1} parent=1 // pred_check_branch
      %31 = sbr.rel (0) target = $region33
    $region32: #{tpu_custom_call.1} parent=1 // pred_region
      _
    $region33: #{tpu_custom_call.1} parent=1 // pred_fallthru
      _
    // Predicated region
    $region34: #{tpu_custom_call.1} parent=1 // pred_check
      _
    $region35: #{tpu_custom_call.1} parent=1 // pred_check_branch
      %33 = sbr.rel (0) target = $region37
    $region36: #{tpu_custom_call.1} parent=1 // pred_region
      _
    $region37: #{tpu_custom_call.1} parent=1 // pred_fallthru
      _
    // Predicated region
    $region38: #{tpu_custom_call.1} parent=1 // pred_check
      _
    $region39: #{tpu_custom_call.1} parent=1 // pred_check_branch
      %35 = sbr.rel (0) target = $region41
    $region40: #{tpu_custom_call.1} parent=1 // pred_region
      _
    $region41: #{tpu_custom_call.1} parent=1 // pred_fallthru
      _
    %v36 = vld [vmem:[%s2] sm:$0xff]
    %v37 = vld [vmem:[%s2 + $0x8] sm:$0xff]
    %v38 = vld [vmem:[%s3] sm:$0xff]
    %v39 = vld [vmem:[%s3 + $0x8] sm:$0xff]
    %v40 = vld [vmem:[%s0] sm:$0xff]
    %vm41 = vcmask 130048
    %v43 = vsel %vm41, %v40, 0
    %45 = vmatpush.msra.mxu0 0.0
    %46 = vmatpush.msra.mxu0 0.0
    %47 = vmatpush.msra.mxu0 0.0
    %48 = vmatpush.msra.mxu0 0.0
    %49 = vmatpush.msra.mxu0 0.0
    %50 = vmatpush.msra.mxu0 0.0
    %51 = vmatpush.msra.mxu0 0.0
    %52 = vmatpush.msra.mxu0 0.0
    %53 = vmatpush.msra.mxu0 0.0
    %54 = vmatpush.msra.mxu0 0.0
    %55 = vmatpush.msra.mxu0 0.0
    %56 = vmatpush.msra.mxu0 0.0
    %57 = vmatpush.msra.mxu0 0.0
    %58 = vmatpush.msra.mxu0 0.0
    %59 = vmatpush.msra.mxu0 %v37
    %60 = vmatpush.msra.mxu0 %v36
    %61 = vmatmul.f32.gmra.mxu0 %v43
    %v62 = vpop.f32.mrf.mxu0
    %v63 = vadd.f32 0.0, %v62
    %64 = vdwg.mxu0
    %v66 = vsel %vm41, %v63, 0
    %68 = vmatpush.msra.mxu0 0.0
    %69 = vmatpush.msra.mxu0 0.0
    %70 = vmatpush.msra.mxu0 0.0
    %71 = vmatpush.msra.mxu0 0.0
    %72 = vmatpush.msra.mxu0 0.0
    %73 = vmatpush.msra.mxu0 0.0
    %74 = vmatpush.msra.mxu0 0.0
    %75 = vmatpush.msra.mxu0 0.0
    %76 = vmatpush.msra.mxu0 0.0
    %77 = vmatpush.msra.mxu0 0.0
    %78 = vmatpush.msra.mxu0 0.0
    %79 = vmatpush.msra.mxu0 0.0
    %80 = vmatpush.msra.mxu0 0.0
    %81 = vmatpush.msra.mxu0 0.0
    %82 = vmatpush.msra.mxu0 %v39
    %83 = vmatpush.msra.mxu0 %v38
    %84 = vmatmul.f32.gmra.mxu0 %v66
    %v85 = vpop.f32.mrf.mxu0
    %v86 = vadd.f32 0.0, %v85
    %87 = vdwg.mxu0
    %89 = vrot.lane.b32.xlu0 %v86, 127
    %v90 = vpop.permute.xlu0 %89
    %92 = vxpose.xlu0.b32.start [1/16] %v90, 128
    %93 = vxpose.xlu0.b32.cont [2/16] 0.0, 128
    %94 = vxpose.xlu0.b32.cont [3/16] 0.0, 128
    %95 = vxpose.xlu0.b32.cont [4/16] 0.0, 128
    %96 = vxpose.xlu0.b32.cont [5/16] 0.0, 128
    %97 = vxpose.xlu0.b32.cont [6/16] 0.0, 128
    %98 = vxpose.xlu0.b32.cont [7/16] 0.0, 128
    %99 = vxpose.xlu0.b32.cont [8/16] 0.0, 128
    %100 = vxpose.xlu0.b32.cont [9/16] 0.0, 128
    %101 = vxpose.xlu0.b32.cont [10/16] 0.0, 128
    %102 = vxpose.xlu0.b32.cont [11/16] 0.0, 128
    %103 = vxpose.xlu0.b32.cont [12/16] 0.0, 128
    %104 = vxpose.xlu0.b32.cont [13/16] 0.0, 128
    %105 = vxpose.xlu0.b32.cont [14/16] 0.0, 128
    %106 = vxpose.xlu0.b32.cont [15/16] 0.0, 128
    %107 = vxpose.xlu0.b32.end [16/16] 0.0, 128
    %v108 = vpop.trf.xlu0
    %v109 = vpop.trf.xlu0
    %v110 = vpop.trf.xlu0
    %v111 = vpop.trf.xlu0
    %v112 = vpop.trf.xlu0
    %v113 = vpop.trf.xlu0
    %v114 = vpop.trf.xlu0
    %v115 = vpop.trf.xlu0
    %v116 = vpop.trf.xlu0
    %v117 = vpop.trf.xlu0
    %v118 = vpop.trf.xlu0
    %v119 = vpop.trf.xlu0
    %v120 = vpop.trf.xlu0
    %v121 = vpop.trf.xlu0
    %v122 = vpop.trf.xlu0
    %v123 = vpop.trf.xlu0
    %124 = vset.pattern.permute.xlu0 0
    %125 = vperm.xlu0 %124, %v86
    %v126 = vpop.permute.xlu0 %125
    %v128 = vperm.slane %v108, 0
    %v129 = vadd.f32 %v126, %v128
    %vm130 = vcmp.gt.f32.partialorder %v129, 0.0
    %v131 = vmul.f32 %v129, 0.2
    %v132 = vsel %vm130, %v129, %v131
    %vm133 = vcmask 64512
    %v134 = vsel %vm133, %v132, -inf
    %135 = vmax.xlane.f32.xlu0 %v134
    %v136 = vpop.xlane.xlu0 %135
    %v137 = vsub.f32 %v132, %v136
    %v138 = vmul.f32 %v137, 1.442695
    %v139 = vpow.pop %v138
    %v140 = vsel %vm133, %v139, 0.0
    %141 = vadd.xlane.f32.xlu0 %v140
    %v142 = vpop.xlane.xlu0 %141
    %v143 = vrcp.pop %v142
    %v144 = vmul.f32 %v139, %v143
    %v146 = vsel %vm133, %v144, 0
    %148 = vmatpush.msra.mxu0 0.0
    %149 = vmatpush.msra.mxu0 0.0
    %150 = vmatpush.msra.mxu0 0.0
    %151 = vmatpush.msra.mxu0 0.0
    %152 = vmatpush.msra.mxu0 0.0
    %153 = vmatpush.msra.mxu0 0.0
    %154 = vmatpush.msra.mxu0 0.0
    %155 = vmatpush.msra.mxu0 0.0
    %156 = vmatpush.msra.mxu0 0.0
    %157 = vmatpush.msra.mxu0 0.0
    %158 = vmatpush.msra.mxu0 0.0
    %159 = vmatpush.msra.mxu0 0.0
    %160 = vmatpush.msra.mxu0 0.0
    %161 = vmatpush.msra.mxu0 0.0
    %162 = vmatpush.msra.mxu0 0.0
    %163 = vmatpush.msra.mxu0 %v63
    %164 = vmatmul.f32.gmra.mxu0 %v146
    %v165 = vpop.f32.mrf.mxu0
    %v166 = vadd.f32 0.0, %v165
    %167 = vdwg.mxu0
    %vm168 = vcmp.gt.f32.partialorder %v166, 0.0
    %v169 = vmin.f32 %v166, 0.0
    %v170 = vmul.f32 %v169, 1.442695
    %v171 = vpow.pop %v170
    %v172 = vsub.f32 %v171, 1.0
    %v173 = vsel %vm168, %v166, %v172
    %v174 = vld [vmem:[%s4] sm:$0xff]
    %176 = vset.pattern.permute.xlu0 0
    %177 = vperm.xlu0 %176, %v173
    %v178 = vpop.permute.xlu0 %177
    %v180 = vmul.f32 %v178, %v174
    %vm181 = vcmask 261120
    %v182 = vsel %vm181, %v180, 0.0
    %v183 = vrot.slane %v182, 4
    %v184 = vadd.f32 %v182, %v183
    %v185 = vrot.slane %v184, 2
    %v186 = vadd.f32 %v184, %v185
    %v187 = vrot.slane %v186, 1
    %v188 = vadd.f32 %v186, %v187
    %v189 = vadd.f32 %v188, 0.0
    %s190 = scalar_lea.vmem %s4, 8
    %v191 = vld [vmem:[%s190] sm:$0xff]
    %192 = vset.pattern.permute.xlu0 1
    %193 = vperm.xlu0 %192, %v173
    %v194 = vpop.permute.xlu0 %193
    %v196 = vmul.f32 %v194, %v191
    %v197 = vsel %vm181, %v196, 0.0
    %v198 = vrot.slane %v197, 4
    %v199 = vadd.f32 %v197, %v198
    %v200 = vrot.slane %v199, 2
    %v201 = vadd.f32 %v199, %v200
    %v202 = vrot.slane %v201, 1
    %v203 = vadd.f32 %v201, %v202
    %v204 = vadd.f32 %v189, %v203
    %s205 = scalar_lea.vmem %s4, 16
    %v206 = vld [vmem:[%s205] sm:$0xff]
    %207 = vset.pattern.permute.xlu0 2
    %208 = vperm.xlu0 %207, %v173
    %v209 = vpop.permute.xlu0 %208
    %v211 = vmul.f32 %v209, %v206
    %v212 = vsel %vm181, %v211, 0.0
    %v213 = vrot.slane %v212, 4
    %v214 = vadd.f32 %v212, %v213
    %v215 = vrot.slane %v214, 2
    %v216 = vadd.f32 %v214, %v215
    %v217 = vrot.slane %v216, 1
    %v218 = vadd.f32 %v216, %v217
    %v219 = vadd.f32 %v204, %v218
    %s220 = scalar_lea.vmem %s4, 24
    %v221 = vld [vmem:[%s220] sm:$0xff]
    %222 = vset.pattern.permute.xlu0 3
    %223 = vperm.xlu0 %222, %v173
    %v224 = vpop.permute.xlu0 %223
    %v226 = vmul.f32 %v224, %v221
    %v227 = vsel %vm181, %v226, 0.0
    %v228 = vrot.slane %v227, 4
    %v229 = vadd.f32 %v227, %v228
    %v230 = vrot.slane %v229, 2
    %v231 = vadd.f32 %v229, %v230
    %v232 = vrot.slane %v231, 1
    %v233 = vadd.f32 %v231, %v232
    %v234 = vadd.f32 %v219, %v233
    %s235 = scalar_lea.vmem %s4, 32
    %v236 = vld [vmem:[%s235] sm:$0xff]
    %237 = vset.pattern.permute.xlu0 4
    %238 = vperm.xlu0 %237, %v173
    %v239 = vpop.permute.xlu0 %238
    %v241 = vmul.f32 %v239, %v236
    %v242 = vsel %vm181, %v241, 0.0
    %v243 = vrot.slane %v242, 4
    %v244 = vadd.f32 %v242, %v243
    %v245 = vrot.slane %v244, 2
    %v246 = vadd.f32 %v244, %v245
    %v247 = vrot.slane %v246, 1
    %v248 = vadd.f32 %v246, %v247
    %v249 = vadd.f32 %v234, %v248
    %s250 = scalar_lea.vmem %s4, 40
    %v251 = vld [vmem:[%s250] sm:$0xff]
    %252 = vset.pattern.permute.xlu0 5
    %253 = vperm.xlu0 %252, %v173
    %v254 = vpop.permute.xlu0 %253
    %v256 = vmul.f32 %v254, %v251
    %v257 = vsel %vm181, %v256, 0.0
    %v258 = vrot.slane %v257, 4
    %v259 = vadd.f32 %v257, %v258
    %v260 = vrot.slane %v259, 2
    %v261 = vadd.f32 %v259, %v260
    %v262 = vrot.slane %v261, 1
    %v263 = vadd.f32 %v261, %v262
    %v264 = vadd.f32 %v249, %v263
    %s265 = scalar_lea.vmem %s4, 48
    %v266 = vld [vmem:[%s265] sm:$0xff]
    %267 = vset.pattern.permute.xlu0 6
    %268 = vperm.xlu0 %267, %v173
    %v269 = vpop.permute.xlu0 %268
    %v271 = vmul.f32 %v269, %v266
    %v272 = vsel %vm181, %v271, 0.0
    %v273 = vrot.slane %v272, 4
    %v274 = vadd.f32 %v272, %v273
    %v275 = vrot.slane %v274, 2
    %v276 = vadd.f32 %v274, %v275
    %v277 = vrot.slane %v276, 1
    %v278 = vadd.f32 %v276, %v277
    %v279 = vadd.f32 %v264, %v278
    %s280 = scalar_lea.vmem %s4, 56
    %v281 = vld [vmem:[%s280] sm:$0xff]
    %282 = vset.pattern.permute.xlu0 7
    %283 = vperm.xlu0 %282, %v173
    %v284 = vpop.permute.xlu0 %283
    %v286 = vmul.f32 %v284, %v281
    %v287 = vsel %vm181, %v286, 0.0
    %v288 = vrot.slane %v287, 4
    %v289 = vadd.f32 %v287, %v288
    %v290 = vrot.slane %v289, 2
    %v291 = vadd.f32 %v289, %v290
    %v292 = vrot.slane %v291, 1
    %v293 = vadd.f32 %v291, %v292
    %v294 = vadd.f32 %v279, %v293
    %295 = vrot.lane.b32.xlu0 %v86, 125
    %v296 = vpop.permute.xlu0 %295
    %298 = vxpose.xlu0.b32.start [1/16] %v296, 128
    %299 = vxpose.xlu0.b32.cont [2/16] 0.0, 128
    %300 = vxpose.xlu0.b32.cont [3/16] 0.0, 128
    %301 = vxpose.xlu0.b32.cont [4/16] 0.0, 128
    %302 = vxpose.xlu0.b32.cont [5/16] 0.0, 128
    %303 = vxpose.xlu0.b32.cont [6/16] 0.0, 128
    %304 = vxpose.xlu0.b32.cont [7/16] 0.0, 128
    %305 = vxpose.xlu0.b32.cont [8/16] 0.0, 128
    %306 = vxpose.xlu0.b32.cont [9/16] 0.0, 128
    %307 = vxpose.xlu0.b32.cont [10/16] 0.0, 128
    %308 = vxpose.xlu0.b32.cont [11/16] 0.0, 128
    %309 = vxpose.xlu0.b32.cont [12/16] 0.0, 128
    %310 = vxpose.xlu0.b32.cont [13/16] 0.0, 128
    %311 = vxpose.xlu0.b32.cont [14/16] 0.0, 128
    %312 = vxpose.xlu0.b32.cont [15/16] 0.0, 128
    %313 = vxpose.xlu0.b32.end [16/16] 0.0, 128
    %v314 = vpop.trf.xlu0
    %v315 = vpop.trf.xlu0
    %v316 = vpop.trf.xlu0
    %v317 = vpop.trf.xlu0
    %v318 = vpop.trf.xlu0
    %v319 = vpop.trf.xlu0
    %v320 = vpop.trf.xlu0
    %v321 = vpop.trf.xlu0
    %v322 = vpop.trf.xlu0
    %v323 = vpop.trf.xlu0
    %v324 = vpop.trf.xlu0
    %v325 = vpop.trf.xlu0
    %v326 = vpop.trf.xlu0
    %v327 = vpop.trf.xlu0
    %v328 = vpop.trf.xlu0
    %v329 = vpop.trf.xlu0
    %330 = vset.pattern.permute.xlu0 2
    %331 = vperm.xlu0 %330, %v86
    %v332 = vpop.permute.xlu0 %331
    %v334 = vperm.slane %v314, 0
    %v335 = vadd.f32 %v332, %v334
    %vm336 = vcmp.gt.f32.partialorder %v335, 0.0
    %v337 = vmul.f32 %v335, 0.2
    %v338 = vsel %vm336, %v335, %v337
    %v339 = vsel %vm133, %v338, -inf
    %340 = vmax.xlane.f32.xlu0 %v339
    %v341 = vpop.xlane.xlu0 %340
    %v342 = vsub.f32 %v338, %v341
    %v343 = vmul.f32 %v342, 1.442695
    %v344 = vpow.pop %v343
    %v345 = vsel %vm133, %v344, 0.0
    %346 = vadd.xlane.f32.xlu0 %v345
    %v347 = vpop.xlane.xlu0 %346
    %v348 = vrcp.pop %v347
    %v349 = vmul.f32 %v344, %v348
    %350 = vrot.lane.b32.xlu0 %v63, 120
    %v351 = vpop.permute.xlu0 %350
    %v354 = vsel %vm133, %v349, 0
    %356 = vmatpush.msra.mxu0 0.0
    %357 = vmatpush.msra.mxu0 0.0
    %358 = vmatpush.msra.mxu0 0.0
    %359 = vmatpush.msra.mxu0 0.0
    %360 = vmatpush.msra.mxu0 0.0
    %361 = vmatpush.msra.mxu0 0.0
    %362 = vmatpush.msra.mxu0 0.0
    %363 = vmatpush.msra.mxu0 0.0
    %364 = vmatpush.msra.mxu0 0.0
    %365 = vmatpush.msra.mxu0 0.0
    %366 = vmatpush.msra.mxu0 0.0
    %367 = vmatpush.msra.mxu0 0.0
    %368 = vmatpush.msra.mxu0 0.0
    %369 = vmatpush.msra.mxu0 0.0
    %370 = vmatpush.msra.mxu0 0.0
    %371 = vmatpush.msra.mxu0 %v351
    %372 = vmatmul.f32.gmra.mxu0 %v354
    %v373 = vpop.f32.mrf.mxu0
    %v374 = vadd.f32 0.0, %v373
    %375 = vdwg.mxu0
    %vm376 = vcmp.gt.f32.partialorder %v374, 0.0
    %v377 = vmin.f32 %v374, 0.0
    %v378 = vmul.f32 %v377, 1.442695
    %v379 = vpow.pop %v378
    %v380 = vsub.f32 %v379, 1.0
    %v381 = vsel %vm376, %v374, %v380
    %s382 = scalar_lea.vmem %s4, 64
    %v383 = vld [vmem:[%s382] sm:$0xff]
    %385 = vset.pattern.permute.xlu0 0
    %386 = vperm.xlu0 %385, %v381
    %v387 = vpop.permute.xlu0 %386
    %v389 = vmul.f32 %v387, %v383
    %v390 = vsel %vm181, %v389, 0.0
    %v391 = vrot.slane %v390, 4
    %v392 = vadd.f32 %v390, %v391
    %v393 = vrot.slane %v392, 2
    %v394 = vadd.f32 %v392, %v393
    %v395 = vrot.slane %v394, 1
    %v396 = vadd.f32 %v394, %v395
    %v397 = vadd.f32 %v294, %v396
    %s398 = scalar_lea.vmem %s4, 72
    %v399 = vld [vmem:[%s398] sm:$0xff]
    %400 = vset.pattern.permute.xlu0 1
    %401 = vperm.xlu0 %400, %v381
    %v402 = vpop.permute.xlu0 %401
    %v404 = vmul.f32 %v402, %v399
    %v405 = vsel %vm181, %v404, 0.0
    %v406 = vrot.slane %v405, 4
    %v407 = vadd.f32 %v405, %v406
    %v408 = vrot.slane %v407, 2
    %v409 = vadd.f32 %v407, %v408
    %v410 = vrot.slane %v409, 1
    %v411 = vadd.f32 %v409, %v410
    %v412 = vadd.f32 %v397, %v411
    %s413 = scalar_lea.vmem %s4, 80
    %v414 = vld [vmem:[%s413] sm:$0xff]
    %415 = vset.pattern.permute.xlu0 2
    %416 = vperm.xlu0 %415, %v381
    %v417 = vpop.permute.xlu0 %416
    %v419 = vmul.f32 %v417, %v414
    %v420 = vsel %vm181, %v419, 0.0
    %v421 = vrot.slane %v420, 4
    %v422 = vadd.f32 %v420, %v421
    %v423 = vrot.slane %v422, 2
    %v424 = vadd.f32 %v422, %v423
    %v425 = vrot.slane %v424, 1
    %v426 = vadd.f32 %v424, %v425
    %v427 = vadd.f32 %v412, %v426
    %s428 = scalar_lea.vmem %s4, 88
    %v429 = vld [vmem:[%s428] sm:$0xff]
    %430 = vset.pattern.permute.xlu0 3
    %431 = vperm.xlu0 %430, %v381
    %v432 = vpop.permute.xlu0 %431
    %v434 = vmul.f32 %v432, %v429
    %v435 = vsel %vm181, %v434, 0.0
    %v436 = vrot.slane %v435, 4
    %v437 = vadd.f32 %v435, %v436
    %v438 = vrot.slane %v437, 2
    %v439 = vadd.f32 %v437, %v438
    %v440 = vrot.slane %v439, 1
    %v441 = vadd.f32 %v439, %v440
    %v442 = vadd.f32 %v427, %v441
    %s443 = scalar_lea.vmem %s4, 96
    %v444 = vld [vmem:[%s443] sm:$0xff]
    %445 = vset.pattern.permute.xlu0 4
    %446 = vperm.xlu0 %445, %v381
    %v447 = vpop.permute.xlu0 %446
    %v449 = vmul.f32 %v447, %v444
    %v450 = vsel %vm181, %v449, 0.0
    %v451 = vrot.slane %v450, 4
    %v452 = vadd.f32 %v450, %v451
    %v453 = vrot.slane %v452, 2
    %v454 = vadd.f32 %v452, %v453
    %v455 = vrot.slane %v454, 1
    %v456 = vadd.f32 %v454, %v455
    %v457 = vadd.f32 %v442, %v456
    %s458 = scalar_lea.vmem %s4, 104
    %v459 = vld [vmem:[%s458] sm:$0xff]
    %460 = vset.pattern.permute.xlu0 5
    %461 = vperm.xlu0 %460, %v381
    %v462 = vpop.permute.xlu0 %461
    %v464 = vmul.f32 %v462, %v459
    %v465 = vsel %vm181, %v464, 0.0
    %v466 = vrot.slane %v465, 4
    %v467 = vadd.f32 %v465, %v466
    %v468 = vrot.slane %v467, 2
    %v469 = vadd.f32 %v467, %v468
    %v470 = vrot.slane %v469, 1
    %v471 = vadd.f32 %v469, %v470
    %v472 = vadd.f32 %v457, %v471
    %s473 = scalar_lea.vmem %s4, 112
    %v474 = vld [vmem:[%s473] sm:$0xff]
    %475 = vset.pattern.permute.xlu0 6
    %476 = vperm.xlu0 %475, %v381
    %v477 = vpop.permute.xlu0 %476
    %v479 = vmul.f32 %v477, %v474
    %v480 = vsel %vm181, %v479, 0.0
    %v481 = vrot.slane %v480, 4
    %v482 = vadd.f32 %v480, %v481
    %v483 = vrot.slane %v482, 2
    %v484 = vadd.f32 %v482, %v483
    %v485 = vrot.slane %v484, 1
    %v486 = vadd.f32 %v484, %v485
    %v487 = vadd.f32 %v472, %v486
    %s488 = scalar_lea.vmem %s4, 120
    %v489 = vld [vmem:[%s488] sm:$0xff]
    %490 = vset.pattern.permute.xlu0 7
    %491 = vperm.xlu0 %490, %v381
    %v492 = vpop.permute.xlu0 %491
    %v494 = vmul.f32 %v492, %v489
    %v495 = vsel %vm181, %v494, 0.0
    %v496 = vrot.slane %v495, 4
    %v497 = vadd.f32 %v495, %v496
    %v498 = vrot.slane %v497, 2
    %v499 = vadd.f32 %v497, %v498
    %v500 = vrot.slane %v499, 1
    %v501 = vadd.f32 %v499, %v500
    %v502 = vadd.f32 %v487, %v501
    %v503 = vlaneseq
    %v504 = vshrl.u32 %v503, 7
    %vm505 = vcmp.eq.s32.totalorder %v504, 0
    %v506 = vsel %vm505, 1, 0
    %v507 = vcvt.s32.f32 %v506
    %v508 = vmul.f32 %v507, %v502
    %v509 = vadd.f32 %v508, 0.0
    %s510 = scalar_lea.vmem %s0, 8
    %v511 = vld [vmem:[%s510] sm:$0xff]
    %v513 = vsel %vm41, %v511, 0
    %515 = vmatpush.msra.mxu0 0.0
    %516 = vmatpush.msra.mxu0 0.0
    %517 = vmatpush.msra.mxu0 0.0
    %518 = vmatpush.msra.mxu0 0.0
    %519 = vmatpush.msra.mxu0 0.0
    %520 = vmatpush.msra.mxu0 0.0
    %521 = vmatpush.msra.mxu0 0.0
    %522 = vmatpush.msra.mxu0 0.0
    %523 = vmatpush.msra.mxu0 0.0
    %524 = vmatpush.msra.mxu0 0.0
    %525 = vmatpush.msra.mxu0 0.0
    %526 = vmatpush.msra.mxu0 0.0
    %527 = vmatpush.msra.mxu0 0.0
    %528 = vmatpush.msra.mxu0 0.0
    %529 = vmatpush.msra.mxu0 %v37
    %530 = vmatpush.msra.mxu0 %v36
    %531 = vmatmul.f32.gmra.mxu0 %v513
    %v532 = vpop.f32.mrf.mxu0
    %v533 = vadd.f32 0.0, %v532
    %534 = vdwg.mxu0
    %v536 = vsel %vm41, %v533, 0
    %538 = vmatpush.msra.mxu0 0.0
    %539 = vmatpush.msra.mxu0 0.0
    %540 = vmatpush.msra.mxu0 0.0
    %541 = vmatpush.msra.mxu0 0.0
    %542 = vmatpush.msra.mxu0 0.0
    %543 = vmatpush.msra.mxu0 0.0
    %544 = vmatpush.msra.mxu0 0.0
    %545 = vmatpush.msra.mxu0 0.0
    %546 = vmatpush.msra.mxu0 0.0
    %547 = vmatpush.msra.mxu0 0.0
    %548 = vmatpush.msra.mxu0 0.0
    %549 = vmatpush.msra.mxu0 0.0
    %550 = vmatpush.msra.mxu0 0.0
    %551 = vmatpush.msra.mxu0 0.0
    %552 = vmatpush.msra.mxu0 %v39
    %553 = vmatpush.msra.mxu0 %v38
    %554 = vmatmul.f32.gmra.mxu0 %v536
    %v555 = vpop.f32.mrf.mxu0
    %v556 = vadd.f32 0.0, %v555
    %557 = vdwg.mxu0
    %559 = vrot.lane.b32.xlu0 %v556, 127
    %v560 = vpop.permute.xlu0 %559
    %562 = vxpose.xlu0.b32.start [1/16] %v560, 128
    %563 = vxpose.xlu0.b32.cont [2/16] 0.0, 128
    %564 = vxpose.xlu0.b32.cont [3/16] 0.0, 128
    %565 = vxpose.xlu0.b32.cont [4/16] 0.0, 128
    %566 = vxpose.xlu0.b32.cont [5/16] 0.0, 128
    %567 = vxpose.xlu0.b32.cont [6/16] 0.0, 128
    %568 = vxpose.xlu0.b32.cont [7/16] 0.0, 128
    %569 = vxpose.xlu0.b32.cont [8/16] 0.0, 128
    %570 = vxpose.xlu0.b32.cont [9/16] 0.0, 128
    %571 = vxpose.xlu0.b32.cont [10/16] 0.0, 128
    %572 = vxpose.xlu0.b32.cont [11/16] 0.0, 128
    %573 = vxpose.xlu0.b32.cont [12/16] 0.0, 128
    %574 = vxpose.xlu0.b32.cont [13/16] 0.0, 128
    %575 = vxpose.xlu0.b32.cont [14/16] 0.0, 128
    %576 = vxpose.xlu0.b32.cont [15/16] 0.0, 128
    %577 = vxpose.xlu0.b32.end [16/16] 0.0, 128
    %v578 = vpop.trf.xlu0
    %v579 = vpop.trf.xlu0
    %v580 = vpop.trf.xlu0
    %v581 = vpop.trf.xlu0
    %v582 = vpop.trf.xlu0
    %v583 = vpop.trf.xlu0
    %v584 = vpop.trf.xlu0
    %v585 = vpop.trf.xlu0
    %v586 = vpop.trf.xlu0
    %v587 = vpop.trf.xlu0
    %v588 = vpop.trf.xlu0
    %v589 = vpop.trf.xlu0
    %v590 = vpop.trf.xlu0
    %v591 = vpop.trf.xlu0
    %v592 = vpop.trf.xlu0
    %v593 = vpop.trf.xlu0
    %594 = vset.pattern.permute.xlu0 0
    %595 = vperm.xlu0 %594, %v556
    %v596 = vpop.permute.xlu0 %595
    %v598 = vperm.slane %v578, 0
    %v599 = vadd.f32 %v596, %v598
    %vm600 = vcmp.gt.f32.partialorder %v599, 0.0
    %v601 = vmul.f32 %v599, 0.2
    %v602 = vsel %vm600, %v599, %v601
    %v603 = vsel %vm133, %v602, -inf
    %604 = vmax.xlane.f32.xlu0 %v603
    %v605 = vpop.xlane.xlu0 %604
    %v606 = vsub.f32 %v602, %v605
    %v607 = vmul.f32 %v606, 1.442695
    %v608 = vpow.pop %v607
    %v609 = vsel %vm133, %v608, 0.0
    %610 = vadd.xlane.f32.xlu0 %v609
    %v611 = vpop.xlane.xlu0 %610
    %v612 = vrcp.pop %v611
    %v613 = vmul.f32 %v608, %v612
    %v615 = vsel %vm133, %v613, 0
    %617 = vmatpush.msra.mxu0 0.0
    %618 = vmatpush.msra.mxu0 0.0
    %619 = vmatpush.msra.mxu0 0.0
    %620 = vmatpush.msra.mxu0 0.0
    %621 = vmatpush.msra.mxu0 0.0
    %622 = vmatpush.msra.mxu0 0.0
    %623 = vmatpush.msra.mxu0 0.0
    %624 = vmatpush.msra.mxu0 0.0
    %625 = vmatpush.msra.mxu0 0.0
    %626 = vmatpush.msra.mxu0 0.0
    %627 = vmatpush.msra.mxu0 0.0
    %628 = vmatpush.msra.mxu0 0.0
    %629 = vmatpush.msra.mxu0 0.0
    %630 = vmatpush.msra.mxu0 0.0
    %631 = vmatpush.msra.mxu0 0.0
    %632 = vmatpush.msra.mxu0 %v533
    %633 = vmatmul.f32.gmra.mxu0 %v615
    %v634 = vpop.f32.mrf.mxu0
    %v635 = vadd.f32 0.0, %v634
    %636 = vdwg.mxu0
    %vm637 = vcmp.gt.f32.partialorder %v635, 0.0
    %v638 = vmin.f32 %v635, 0.0
    %v639 = vmul.f32 %v638, 1.442695
    %v640 = vpow.pop %v639
    %v641 = vsub.f32 %v640, 1.0
    %v642 = vsel %vm637, %v635, %v641
    %644 = vset.pattern.permute.xlu0 0
    %645 = vperm.xlu0 %644, %v642
    %v646 = vpop.permute.xlu0 %645
    %v648 = vmul.f32 %v646, %v174
    %v649 = vsel %vm181, %v648, 0.0
    %v650 = vrot.slane %v649, 4
    %v651 = vadd.f32 %v649, %v650
    %v652 = vrot.slane %v651, 2
    %v653 = vadd.f32 %v651, %v652
    %v654 = vrot.slane %v653, 1
    %v655 = vadd.f32 %v653, %v654
    %v656 = vadd.f32 %v655, 0.0
    %657 = vset.pattern.permute.xlu0 1
    %658 = vperm.xlu0 %657, %v642
    %v659 = vpop.permute.xlu0 %658
    %v661 = vmul.f32 %v659, %v191
    %v662 = vsel %vm181, %v661, 0.0
    %v663 = vrot.slane %v662, 4
    %v664 = vadd.f32 %v662, %v663
    %v665 = vrot.slane %v664, 2
    %v666 = vadd.f32 %v664, %v665
    %v667 = vrot.slane %v666, 1
    %v668 = vadd.f32 %v666, %v667
    %v669 = vadd.f32 %v656, %v668
    %670 = vset.pattern.permute.xlu0 2
    %671 = vperm.xlu0 %670, %v642
    %v672 = vpop.permute.xlu0 %671
    %v674 = vmul.f32 %v672, %v206
    %v675 = vsel %vm181, %v674, 0.0
    %v676 = vrot.slane %v675, 4
    %v677 = vadd.f32 %v675, %v676
    %v678 = vrot.slane %v677, 2
    %v679 = vadd.f32 %v677, %v678
    %v680 = vrot.slane %v679, 1
    %v681 = vadd.f32 %v679, %v680
    %v682 = vadd.f32 %v669, %v681
    %683 = vset.pattern.permute.xlu0 3
    %684 = vperm.xlu0 %683, %v642
    %v685 = vpop.permute.xlu0 %684
    %v687 = vmul.f32 %v685, %v221
    %v688 = vsel %vm181, %v687, 0.0
    %v689 = vrot.slane %v688, 4
    %v690 = vadd.f32 %v688, %v689
    %v691 = vrot.slane %v690, 2
    %v692 = vadd.f32 %v690, %v691
    %v693 = vrot.slane %v692, 1
    %v694 = vadd.f32 %v692, %v693
    %v695 = vadd.f32 %v682, %v694
    %696 = vset.pattern.permute.xlu0 4
    %697 = vperm.xlu0 %696, %v642
    %v698 = vpop.permute.xlu0 %697
    %v700 = vmul.f32 %v698, %v236
    %v701 = vsel %vm181, %v700, 0.0
    %v702 = vrot.slane %v701, 4
    %v703 = vadd.f32 %v701, %v702
    %v704 = vrot.slane %v703, 2
    %v705 = vadd.f32 %v703, %v704
    %v706 = vrot.slane %v705, 1
    %v707 = vadd.f32 %v705, %v706
    %v708 = vadd.f32 %v695, %v707
    %709 = vset.pattern.permute.xlu0 5
    %710 = vperm.xlu0 %709, %v642
    %v711 = vpop.permute.xlu0 %710
    %v713 = vmul.f32 %v711, %v251
    %v714 = vsel %vm181, %v713, 0.0
    %v715 = vrot.slane %v714, 4
    %v716 = vadd.f32 %v714, %v715
    %v717 = vrot.slane %v716, 2
    %v718 = vadd.f32 %v716, %v717
    %v719 = vrot.slane %v718, 1
    %v720 = vadd.f32 %v718, %v719
    %v721 = vadd.f32 %v708, %v720
    %722 = vset.pattern.permute.xlu0 6
    %723 = vperm.xlu0 %722, %v642
    %v724 = vpop.permute.xlu0 %723
    %v726 = vmul.f32 %v724, %v266
    %v727 = vsel %vm181, %v726, 0.0
    %v728 = vrot.slane %v727, 4
    %v729 = vadd.f32 %v727, %v728
    %v730 = vrot.slane %v729, 2
    %v731 = vadd.f32 %v729, %v730
    %v732 = vrot.slane %v731, 1
    %v733 = vadd.f32 %v731, %v732
    %v734 = vadd.f32 %v721, %v733
    %735 = vset.pattern.permute.xlu0 7
    %736 = vperm.xlu0 %735, %v642
    %v737 = vpop.permute.xlu0 %736
    %v739 = vmul.f32 %v737, %v281
    %v740 = vsel %vm181, %v739, 0.0
    %v741 = vrot.slane %v740, 4
    %v742 = vadd.f32 %v740, %v741
    %v743 = vrot.slane %v742, 2
    %v744 = vadd.f32 %v742, %v743
    %v745 = vrot.slane %v744, 1
    %v746 = vadd.f32 %v744, %v745
    %v747 = vadd.f32 %v734, %v746
    %748 = vrot.lane.b32.xlu0 %v556, 125
    %v749 = vpop.permute.xlu0 %748
    %751 = vxpose.xlu0.b32.start [1/16] %v749, 128
    %752 = vxpose.xlu0.b32.cont [2/16] 0.0, 128
    %753 = vxpose.xlu0.b32.cont [3/16] 0.0, 128
    %754 = vxpose.xlu0.b32.cont [4/16] 0.0, 128
    %755 = vxpose.xlu0.b32.cont [5/16] 0.0, 128
    %756 = vxpose.xlu0.b32.cont [6/16] 0.0, 128
    %757 = vxpose.xlu0.b32.cont [7/16] 0.0, 128
    %758 = vxpose.xlu0.b32.cont [8/16] 0.0, 128
    %759 = vxpose.xlu0.b32.cont [9/16] 0.0, 128
    %760 = vxpose.xlu0.b32.cont [10/16] 0.0, 128
    %761 = vxpose.xlu0.b32.cont [11/16] 0.0, 128
    %762 = vxpose.xlu0.b32.cont [12/16] 0.0, 128
    %763 = vxpose.xlu0.b32.cont [13/16] 0.0, 128
    %764 = vxpose.xlu0.b32.cont [14/16] 0.0, 128
    %765 = vxpose.xlu0.b32.cont [15/16] 0.0, 128
    %766 = vxpose.xlu0.b32.end [16/16] 0.0, 128
    %v767 = vpop.trf.xlu0
    %v768 = vpop.trf.xlu0
    %v769 = vpop.trf.xlu0
    %v770 = vpop.trf.xlu0
    %v771 = vpop.trf.xlu0
    %v772 = vpop.trf.xlu0
    %v773 = vpop.trf.xlu0
    %v774 = vpop.trf.xlu0
    %v775 = vpop.trf.xlu0
    %v776 = vpop.trf.xlu0
    %v777 = vpop.trf.xlu0
    %v778 = vpop.trf.xlu0
    %v779 = vpop.trf.xlu0
    %v780 = vpop.trf.xlu0
    %v781 = vpop.trf.xlu0
    %v782 = vpop.trf.xlu0
    %783 = vset.pattern.permute.xlu0 2
    %784 = vperm.xlu0 %783, %v556
    %v785 = vpop.permute.xlu0 %784
    %v787 = vperm.slane %v767, 0
    %v788 = vadd.f32 %v785, %v787
    %vm789 = vcmp.gt.f32.partialorder %v788, 0.0
    %v790 = vmul.f32 %v788, 0.2
    %v791 = vsel %vm789, %v788, %v790
    %v792 = vsel %vm133, %v791, -inf
    %793 = vmax.xlane.f32.xlu0 %v792
    %v794 = vpop.xlane.xlu0 %793
    %v795 = vsub.f32 %v791, %v794
    %v796 = vmul.f32 %v795, 1.442695
    %v797 = vpow.pop %v796
    %v798 = vsel %vm133, %v797, 0.0
    %799 = vadd.xlane.f32.xlu0 %v798
    %v800 = vpop.xlane.xlu0 %799
    %v801 = vrcp.pop %v800
    %v802 = vmul.f32 %v797, %v801
    %803 = vrot.lane.b32.xlu0 %v533, 120
    %v804 = vpop.permute.xlu0 %803
    %v807 = vsel %vm133, %v802, 0
    %809 = vmatpush.msra.mxu0 0.0
    %810 = vmatpush.msra.mxu0 0.0
    %811 = vmatpush.msra.mxu0 0.0
    %812 = vmatpush.msra.mxu0 0.0
    %813 = vmatpush.msra.mxu0 0.0
    %814 = vmatpush.msra.mxu0 0.0
    %815 = vmatpush.msra.mxu0 0.0
    %816 = vmatpush.msra.mxu0 0.0
    %817 = vmatpush.msra.mxu0 0.0
    %818 = vmatpush.msra.mxu0 0.0
    %819 = vmatpush.msra.mxu0 0.0
    %820 = vmatpush.msra.mxu0 0.0
    %821 = vmatpush.msra.mxu0 0.0
    %822 = vmatpush.msra.mxu0 0.0
    %823 = vmatpush.msra.mxu0 0.0
    %824 = vmatpush.msra.mxu0 %v804
    %825 = vmatmul.f32.gmra.mxu0 %v807
    %v826 = vpop.f32.mrf.mxu0
    %v827 = vadd.f32 0.0, %v826
    %828 = vdwg.mxu0
    %vm829 = vcmp.gt.f32.partialorder %v827, 0.0
    %v830 = vmin.f32 %v827, 0.0
    %v831 = vmul.f32 %v830, 1.442695
    %v832 = vpow.pop %v831
    %v833 = vsub.f32 %v832, 1.0
    %v834 = vsel %vm829, %v827, %v833
    %836 = vset.pattern.permute.xlu0 0
    %837 = vperm.xlu0 %836, %v834
    %v838 = vpop.permute.xlu0 %837
    %v840 = vmul.f32 %v838, %v383
    %v841 = vsel %vm181, %v840, 0.0
    %v842 = vrot.slane %v841, 4
    %v843 = vadd.f32 %v841, %v842
    %v844 = vrot.slane %v843, 2
    %v845 = vadd.f32 %v843, %v844
    %v846 = vrot.slane %v845, 1
    %v847 = vadd.f32 %v845, %v846
    %v848 = vadd.f32 %v747, %v847
    %849 = vset.pattern.permute.xlu0 1
    %850 = vperm.xlu0 %849, %v834
    %v851 = vpop.permute.xlu0 %850
    %v853 = vmul.f32 %v851, %v399
    %v854 = vsel %vm181, %v853, 0.0
    %v855 = vrot.slane %v854, 4
    %v856 = vadd.f32 %v854, %v855
    %v857 = vrot.slane %v856, 2
    %v858 = vadd.f32 %v856, %v857
    %v859 = vrot.slane %v858, 1
    %v860 = vadd.f32 %v858, %v859
    %v861 = vadd.f32 %v848, %v860
    %862 = vset.pattern.permute.xlu0 2
    %863 = vperm.xlu0 %862, %v834
    %v864 = vpop.permute.xlu0 %863
    %v866 = vmul.f32 %v864, %v414
    %v867 = vsel %vm181, %v866, 0.0
    %v868 = vrot.slane %v867, 4
    %v869 = vadd.f32 %v867, %v868
    %v870 = vrot.slane %v869, 2
    %v871 = vadd.f32 %v869, %v870
    %v872 = vrot.slane %v871, 1
    %v873 = vadd.f32 %v871, %v872
    %v874 = vadd.f32 %v861, %v873
    %875 = vset.pattern.permute.xlu0 3
    %876 = vperm.xlu0 %875, %v834
    %v877 = vpop.permute.xlu0 %876
    %v879 = vmul.f32 %v877, %v429
    %v880 = vsel %vm181, %v879, 0.0
    %v881 = vrot.slane %v880, 4
    %v882 = vadd.f32 %v880, %v881
    %v883 = vrot.slane %v882, 2
    %v884 = vadd.f32 %v882, %v883
    %v885 = vrot.slane %v884, 1
    %v886 = vadd.f32 %v884, %v885
    %v887 = vadd.f32 %v874, %v886
    %888 = vset.pattern.permute.xlu0 4
    %889 = vperm.xlu0 %888, %v834
    %v890 = vpop.permute.xlu0 %889
    %v892 = vmul.f32 %v890, %v444
    %v893 = vsel %vm181, %v892, 0.0
    %v894 = vrot.slane %v893, 4
    %v895 = vadd.f32 %v893, %v894
    %v896 = vrot.slane %v895, 2
    %v897 = vadd.f32 %v895, %v896
    %v898 = vrot.slane %v897, 1
    %v899 = vadd.f32 %v897, %v898
    %v900 = vadd.f32 %v887, %v899
    %901 = vset.pattern.permute.xlu0 5
    %902 = vperm.xlu0 %901, %v834
    %v903 = vpop.permute.xlu0 %902
    %v905 = vmul.f32 %v903, %v459
    %v906 = vsel %vm181, %v905, 0.0
    %v907 = vrot.slane %v906, 4
    %v908 = vadd.f32 %v906, %v907
    %v909 = vrot.slane %v908, 2
    %v910 = vadd.f32 %v908, %v909
    %v911 = vrot.slane %v910, 1
    %v912 = vadd.f32 %v910, %v911
    %v913 = vadd.f32 %v900, %v912
    %914 = vset.pattern.permute.xlu0 6
    %915 = vperm.xlu0 %914, %v834
    %v916 = vpop.permute.xlu0 %915
    %v918 = vmul.f32 %v916, %v474
    %v919 = vsel %vm181, %v918, 0.0
    %v920 = vrot.slane %v919, 4
    %v921 = vadd.f32 %v919, %v920
    %v922 = vrot.slane %v921, 2
    %v923 = vadd.f32 %v921, %v922
    %v924 = vrot.slane %v923, 1
    %v925 = vadd.f32 %v923, %v924
    %v926 = vadd.f32 %v913, %v925
    %927 = vset.pattern.permute.xlu0 7
    %928 = vperm.xlu0 %927, %v834
    %v929 = vpop.permute.xlu0 %928
    %v931 = vmul.f32 %v929, %v489
    %v932 = vsel %vm181, %v931, 0.0
    %v933 = vrot.slane %v932, 4
    %v934 = vadd.f32 %v932, %v933
    %v935 = vrot.slane %v934, 2
    %v936 = vadd.f32 %v934, %v935
    %v937 = vrot.slane %v936, 1
    %v938 = vadd.f32 %v936, %v937
    %v939 = vadd.f32 %v926, %v938
    %vm940 = vcmp.eq.s32.totalorder %v504, 1
    %v941 = vsel %vm940, 1, 0
    %v942 = vcvt.s32.f32 %v941
    %v943 = vmul.f32 %v942, %v939
    %v944 = vadd.f32 %v509, %v943
    %v945 = vld [vmem:[%s5] sm:$0x1]
    %v947 = vperm.slane %v945, 0
    %v949 = vadd.f32 %v944, %v947
    %v950 = vmax.f32 %v949, 0.0
    %v951 = vld [vmem:[%s1] sm:$0x3]
    %v952 = vld [vmem:[%s6] sm:$0xff]
    %v953 = vld [vmem:[%s6 + $0x8] sm:$0xff]
    %v954 = vld [vmem:[%s6 + $0x10] sm:$0xff]
    %v955 = vld [vmem:[%s6 + $0x18] sm:$0xff]
    %v956 = vld [vmem:[%s6 + $0x20] sm:$0xff]
    %v957 = vld [vmem:[%s6 + $0x28] sm:$0xff]
    %v958 = vld [vmem:[%s6 + $0x30] sm:$0xff]
    %v959 = vld [vmem:[%s6 + $0x38] sm:$0xff]
    %v960 = vld [vmem:[%s6 + $0x40] sm:$0xff]
    %v961 = vld [vmem:[%s6 + $0x48] sm:$0xff]
    %v962 = vld [vmem:[%s6 + $0x50] sm:$0xff]
    %v963 = vld [vmem:[%s6 + $0x58] sm:$0xff]
    %v964 = vld [vmem:[%s6 + $0x60] sm:$0xff]
    %v965 = vld [vmem:[%s6 + $0x68] sm:$0xff]
    %v966 = vld [vmem:[%s6 + $0x70] sm:$0xff]
    %v967 = vld [vmem:[%s6 + $0x78] sm:$0xff]
    %v968 = vld [vmem:[%s7] sm:$0x1]
    %v970 = vperm.slane %v968, 0
    %972 = vmatpush.msra.mxu0 %v967
    %973 = vmatpush.msra.mxu0 %v966
    %974 = vmatpush.msra.mxu0 %v965
    %975 = vmatpush.msra.mxu0 %v964
    %976 = vmatpush.msra.mxu0 %v963
    %977 = vmatpush.msra.mxu0 %v962
    %978 = vmatpush.msra.mxu0 %v961
    %979 = vmatpush.msra.mxu0 %v960
    %980 = vmatpush.msra.mxu0 %v959
    %981 = vmatpush.msra.mxu0 %v958
    %982 = vmatpush.msra.mxu0 %v957
    %983 = vmatpush.msra.mxu0 %v956
    %984 = vmatpush.msra.mxu0 %v955
    %985 = vmatpush.msra.mxu0 %v954
    %986 = vmatpush.msra.mxu0 %v953
    %987 = vmatpush.msra.mxu0 %v952
    %988 = vmatmul.f32.gmra.mxu0 %v951
    %v989 = vpop.f32.mrf.mxu0
    %v990 = vadd.f32 %v970, %v989
    %991 = vdwg.mxu0
    %v992 = vmax.f32 %v990, 0.0
    %v993 = vld [vmem:[%s8] sm:$0xff]
    %v994 = vld [vmem:[%s8 + $0x8] sm:$0xff]
    %v995 = vld [vmem:[%s8 + $0x10] sm:$0xff]
    %v996 = vld [vmem:[%s8 + $0x18] sm:$0xff]
    %v997 = vld [vmem:[%s8 + $0x20] sm:$0xff]
    %v998 = vld [vmem:[%s8 + $0x28] sm:$0xff]
    %v999 = vld [vmem:[%s8 + $0x30] sm:$0xff]
    %v1000 = vld [vmem:[%s8 + $0x38] sm:$0xff]
    %v1001 = vld [vmem:[%s8 + $0x40] sm:$0xff]
    %v1002 = vld [vmem:[%s8 + $0x48] sm:$0xff]
    %v1003 = vld [vmem:[%s8 + $0x50] sm:$0xff]
    %v1004 = vld [vmem:[%s8 + $0x58] sm:$0xff]
    %vm1005 = vcmask 523264
    %v1007 = vsel %vm1005, %v992, 0
    %1009 = vmatpush.msra.mxu0 0.0
    %1010 = vmatpush.msra.mxu0 0.0
    %1011 = vmatpush.msra.mxu0 0.0
    %1012 = vmatpush.msra.mxu0 0.0
    %1013 = vmatpush.msra.mxu0 0.0
    %1014 = vmatpush.msra.mxu0 0.0
    %1015 = vmatpush.msra.mxu0 0.0
    %1016 = vmatpush.msra.mxu0 0.0
    %1017 = vmatpush.msra.mxu0 %v1004
    %1018 = vmatpush.msra.mxu0 %v1003
    %1019 = vmatpush.msra.mxu0 %v1002
    %1020 = vmatpush.msra.mxu0 %v1001
    %1021 = vmatpush.msra.mxu0 %v1000
    %1022 = vmatpush.msra.mxu0 %v999
    %1023 = vmatpush.msra.mxu0 %v998
    %1024 = vmatpush.msra.mxu0 %v997
    %1025 = vmatmul.f32.gmra.mxu0 %v1007
    %v1026 = vpop.f32.mrf.mxu0
    %v1027 = vadd.f32 0.0, %v1026
    %1028 = vdwg.mxu0
    %v1030 = vsel %vm181, %v950, 0
    %1032 = vmatpush.msra.mxu0 0.0
    %1033 = vmatpush.msra.mxu0 0.0
    %1034 = vmatpush.msra.mxu0 0.0
    %1035 = vmatpush.msra.mxu0 0.0
    %1036 = vmatpush.msra.mxu0 0.0
    %1037 = vmatpush.msra.mxu0 0.0
    %1038 = vmatpush.msra.mxu0 0.0
    %1039 = vmatpush.msra.mxu0 0.0
    %1040 = vmatpush.msra.mxu0 0.0
    %1041 = vmatpush.msra.mxu0 0.0
    %1042 = vmatpush.msra.mxu0 0.0
    %1043 = vmatpush.msra.mxu0 0.0
    %1044 = vmatpush.msra.mxu0 %v996
    %1045 = vmatpush.msra.mxu0 %v995
    %1046 = vmatpush.msra.mxu0 %v994
    %1047 = vmatpush.msra.mxu0 %v993
    %1048 = vmatmul.f32.gmra.mxu0 %v1030
    %v1049 = vpop.f32.mrf.mxu0
    %v1050 = vadd.f32 %v1027, %v1049
    %1051 = vdwg.mxu0
    %v1052 = vld [vmem:[%s9] sm:$0x1]
    %v1054 = vperm.slane %v1052, 0
    %v1056 = vadd.f32 %v1050, %v1054
    %v1057 = vmax.f32 %v1056, 0.0
    %vm1058 = vcmask 254976
    %1059 = vst.msk [vmem:[#allocation2] sm:$0x3] %vm1058, %v1057
    // Predicated region
    $region42: #{tpu_custom_call.1} parent=1 // pred_check
      _
    $region43: #{tpu_custom_call.1} parent=1 // pred_check_branch
      %1061 = sbr.rel (0) target = $region45
    $region44: #{tpu_custom_call.1} parent=1 // pred_region
      %1063 = vsyncadd [#allocation3], 0
      %s1065 = sshll.u32 [#allocation2], 4
      %s1066 = int_to_ptr.vmem [resolvable:$true] %s1065
      %s1067 = sshll.u32 %s10, 4
      %s1068 = int_to_ptr.hbm [resolvable:$true] %s1067
      %1070 = dma.vmem_to_hbm [thread:$0]  %s1066, 32, %s1068, [#allocation3]
    $region45: #{tpu_custom_call.1} parent=1 // pred_fallthru
      _
    // Predicated region
    $region46: #{tpu_custom_call.1} parent=1 // pred_check
      _
    $region47: #{tpu_custom_call.1} parent=1 // pred_check_branch
      %1072 = sbr.rel (0) target = $region49
    $region48: #{tpu_custom_call.1} parent=1 // pred_region
      %1074 = dma.done [#allocation3], 32
    $region49: #{tpu_custom_call.1} parent=1 // pred_fallthru
      _
    %1075 = vsyncpa [#allocation3], 1

</llo_original>
